<compile_context>
chip_gen: v5e
topology: v5e:2x2
jax: 0.10.0
libtpu: 0.0.40
codegen_flags: <defaults>
</compile_context>

<pallas_src>
import jax
import jax.numpy as jnp
from jax.experimental import pallas as pl
from jax.experimental.pallas import tpu as pltpu

EPS = 1e-5
SUBLANE = 8


def _round_up(x, m):
    return ((x + m - 1) // m) * m


def _cdiv(a, b):
    return -(-a // b)


def _vmem_budget_bytes():
    """~75% of physical per-TC VMEM (48 MiB on v7x, 96 MiB on v5e/v6e)."""
    cap = 64 * 2 ** 20
    try:
        info = pltpu.get_tpu_info()
        cap = int(getattr(info, "vmem_capacity_bytes", cap))
    except Exception:
        pass
    return (cap * 3) // 4


def _choose_row_tiling(n, requested, per_row_bytes, fixed_bytes, budget):
    n8 = _round_up(n, SUBLANE)
    t = max(SUBLANE, min(_round_up(requested, SUBLANE), n8))
    # Shrink the row tile until the VMEM estimate fits the budget.
    while t > SUBLANE and fixed_bytes + t * per_row_bytes > budget:
        t = max(SUBLANE, _round_up(t // 2, SUBLANE))
    # Keep the grid >= 2 steps so ("parallel",) can use both v7x TensorCores.
    if n8 >= 2 * SUBLANE and _cdiv(n8, t) < 2:
        t = _round_up(_cdiv(n8, 2), SUBLANE)
    return t, _round_up(n, t)


def _make_kernel(n_layers):
    """Kernel over one row tile: [Linear, LayerNorm, ReLU]*(L-1), Linear."""

    def kernel(*refs):
        out_ref = refs[-1]
        h = refs[0][...]                                   # (tile_n, D0)
        idx = 1
        for layer in range(n_layers):
            w = refs[idx][...]                             # (Din, Dout)
            b = refs[idx + 1][...]                         # (1, Dout) f32
            idx += 2
            h = jnp.dot(h.astype(w.dtype), w,
                        preferred_element_type=jnp.float32) + b
            if layer != n_layers - 1:
                g = refs[idx][...]                         # (1, Dout)
                beta = refs[idx + 1][...]                  # (1, Dout)
                idx += 2
                mu = jnp.mean(h, axis=-1, keepdims=True)
                hc = h - mu
                var = jnp.mean(hc * hc, axis=-1, keepdims=True)
                h = hc * jax.lax.rsqrt(var + EPS) * g + beta
                h = jnp.maximum(h, 0.0)                    # ReLU
        out_ref[...] = h.astype(out_ref.dtype)

    return kernel


def dnn_block_forward(x, params, dimensions, normalize_input,
                      matmul_dtype=jnp.bfloat16, tile_n=512,
                      out_dtype=jnp.float32):
    B, S, d0 = x.shape
    assert d0 == dimensions[0]
    n_layers = len(dimensions) - 1
    d_last = dimensions[-1]
    n = B * S
    x_flat = x.reshape(n, d0)

    # ---- Fold training-mode BatchNorm1d into the first Linear layer. -------
    W0 = params["W"][0]
    b0 = params["b"][0]
    if normalize_input:
        xf = x_flat.astype(jnp.float32)
        mu = jnp.mean(xf, axis=0, keepdims=True)           # one fused pass:
        ms = jnp.mean(xf * xf, axis=0, keepdims=True)      # mean and E[x^2]
        var = jnp.maximum(ms - mu * mu, 0.0)               # biased (training)
        bn_a = params["bn_gamma"] * jax.lax.rsqrt(var + EPS)   # (1, D0)
        bn_c = params["bn_beta"] - mu * bn_a                   # (1, D0)
        W0 = bn_a.reshape(-1, 1) * W0                      # row-scale W0
        b0 = b0 + bn_c @ params["W"][0]
        # TODO(synk): BatchNorm1d running_mean/running_var buffer updates are a
        # training-time side effect and are not materialized here (forward uses
        # batch statistics, as in training mode).

    mm_size = jnp.dtype(matmul_dtype).itemsize
    out_size = jnp.dtype(out_dtype).itemsize

    # ---- Row tiling under a generation-aware VMEM budget. ------------------
    param_bytes = 0
    for lyr, (di, do) in enumerate(zip(dimensions[:-1], dimensions[1:])):
        param_bytes += di * do * mm_size + do * 4
        if lyr != n_layers - 1:
            param_bytes += 2 * do * 4
    per_row_bytes = (2 * d0 * mm_size + 2 * d_last * out_size
                     + 8 * max(dimensions) * 4)
    budget = _vmem_budget_bytes()
    tile_n, n_pad = _choose_row_tiling(n, tile_n, per_row_bytes,
                                       2 * param_bytes, budget)

    # ---- Kernel inputs: x (rows padded only to a tile multiple) + params. --
    x_in = x_flat.astype(matmul_dtype)
    if n_pad != n:
        x_in = jnp.pad(x_in, ((0, n_pad - n), (0, 0)))
    inputs = [x_in]
    param_shapes = []
    for layer in range(n_layers):
        W = W0 if layer == 0 else params["W"][layer]
        b = b0 if layer == 0 else params["b"][layer]
        inputs += [W.astype(matmul_dtype), b.astype(jnp.float32)]
        param_shapes += [W.shape, b.shape]
        if layer != n_layers - 1:
            inputs += [params["ln_gamma"][layer].astype(jnp.float32),
                       params["ln_beta"][layer].astype(jnp.float32)]
            param_shapes += [params["ln_gamma"][layer].shape,
                             params["ln_beta"][layer].shape]

    # ---- Advisory cost hints. ----------------------------------------------
    flops = 2 * n_pad * sum(a * b for a, b in zip(dimensions[:-1], dimensions[1:]))
    bytes_accessed = (sum(int(a.size) * a.dtype.itemsize for a in inputs)
                      + n_pad * d_last * out_size)
    transcendentals = n_pad * max(n_layers - 1, 0)
    cost = pl.CostEstimate(flops=int(flops),
                           transcendentals=int(transcendentals),
                           bytes_accessed=int(bytes_accessed))

    kernel = _make_kernel(n_layers)
    grid = (n_pad // tile_n,)
    out_shape = jax.ShapeDtypeStruct((n_pad, d_last), out_dtype)
    out_specs = pl.BlockSpec((tile_n, d_last), lambda i: (i, 0))
    x_spec = pl.BlockSpec((tile_n, d0), lambda i: (i, 0))

    def run(single_buffer_params):
        factor = 1 if single_buffer_params else 2
        vmem_est = factor * param_bytes + tile_n * per_row_bytes
        vmem_limit = int(min(max(vmem_est, 32 * 2 ** 20), budget))
        in_specs = [x_spec]
        for shape in param_shapes:
            if single_buffer_params:
                # Block index never changes -> double-buffering only wastes VMEM.
                spec = pl.BlockSpec(shape, lambda i: (0, 0),
                                    pipeline_mode=pl.Buffered(1))
            else:
                spec = pl.BlockSpec(shape, lambda i: (0, 0))
            in_specs.append(spec)
        return pl.pallas_call(
            kernel,
            out_shape=out_shape,
            grid=grid,
            in_specs=in_specs,
            out_specs=out_specs,
            compiler_params=pltpu.CompilerParams(
                dimension_semantics=("parallel",),
                vmem_limit_bytes=vmem_limit),
            cost_estimate=cost,
        )(*inputs)

    try:
        out_pad = run(single_buffer_params=True)
    except Exception:
        # Fallback if single-buffered params (pl.Buffered(1)) are rejected by
        # this jax/Mosaic version: identical kernel, default double-buffering.
        out_pad = run(single_buffer_params=False)

    out = out_pad if n_pad == n else out_pad[:n]
    return out.reshape(B, S, d_last)


def init_params(key, dimensions, normalize_input):
    """Deterministic synthetic parameter init (shapes follow the nn.Module)."""
    params = {"W": [], "b": [], "ln_gamma": [], "ln_beta": []}
    n_layers = len(dimensions) - 1
    if normalize_input:
        key, k1, k2 = jax.random.split(key, 3)
        d0 = dimensions[0]
        params["bn_gamma"] = 1.0 + 0.1 * jax.random.normal(k1, (1, d0), jnp.float32)
        params["bn_beta"] = 0.1 * jax.random.normal(k2, (1, d0), jnp.float32)
    for layer, (d_in, d_out) in enumerate(zip(dimensions[:-1], dimensions[1:])):
        key, kw, kb, kg, kbeta = jax.random.split(key, 5)
        scale = 1.0 / jnp.sqrt(jnp.float32(d_in))
        params["W"].append(scale * jax.random.normal(kw, (d_in, d_out), jnp.float32))
        params["b"].append(scale * jax.random.normal(kb, (1, d_out), jnp.float32))
        if layer != n_layers - 1:
            params["ln_gamma"].append(
                1.0 + 0.1 * jax.random.normal(kg, (1, d_out), jnp.float32))
            params["ln_beta"].append(
                0.1 * jax.random.normal(kbeta, (1, d_out), jnp.float32))
    return params


def dnn_block_reference(x, params, dimensions, normalize_input):
    """Pure-JAX reference mirroring the PyTorch forward (training-mode BN)."""
    B, S, d0 = x.shape
    h = x.reshape(B * S, d0).astype(jnp.float32)
    n_layers = len(dimensions) - 1
    if normalize_input:
        mu = jnp.mean(h, axis=0, keepdims=True)
        var = jnp.mean((h - mu) ** 2, axis=0, keepdims=True)
        h = (h - mu) / jnp.sqrt(var + EPS) * params["bn_gamma"] + params["bn_beta"]
    for layer in range(n_layers):
        h = h @ params["W"][layer] + params["b"][layer]
        if layer != n_layers - 1:
            mu = jnp.mean(h, axis=-1, keepdims=True)
            var = jnp.mean((h - mu) ** 2, axis=-1, keepdims=True)
            h = (h - mu) / jnp.sqrt(var + EPS)
            h = h * params["ln_gamma"][layer] + params["ln_beta"][layer]
            h = jnp.maximum(h, 0.0)
    return h.reshape(B, S, dimensions[-1])


if __name__ == "__main__":
    dimensions = [32, 64, 64, 16]
    normalize_input = True
    B, S = 2, 8

    key = jax.random.PRNGKey(0)
    key_x, key_p = jax.random.split(key)
    x = jax.random.normal(key_x, (B, S, dimensions[0]), jnp.float32)
    params = init_params(key_p, dimensions, normalize_input)

    ref = dnn_block_reference(x, params, dimensions, normalize_input)

    # f32 matmul path: tight check against the reference (BN fold is exact up
    # to f32 reassociation).
    out_f32 = jax.block_until_ready(
        dnn_block_forward(x, params, dimensions, normalize_input,
                          matmul_dtype=jnp.float32))
    assert out_f32.shape == (B, S, dimensions[-1])
    assert jnp.allclose(out_f32, ref, atol=2e-4, rtol=2e-4), "f32 mismatch vs reference"

    # bf16 matmul path (MXU-native on v5e/v6e/v7x, f32 accumulation).
    out_bf16 = jax.block_until_ready(
        dnn_block_forward(x, params, dimensions, normalize_input,
                          matmul_dtype=jnp.bfloat16))
    assert out_bf16.shape == (B, S, dimensions[-1])
    assert jnp.allclose(out_bf16, ref, atol=0.15, rtol=0.15), "bf16 mismatch vs reference"

    print("KERNEL_OK")
</pallas_src>

<mosaic_0001>
module attributes {stable_mosaic.version = 11 : i64} {
  func.func @kernel(%arg0: i32, %arg1: memref<8x32xf32, #tpu.memory_space<vmem>>, %arg2: memref<32x64xf32, #tpu.memory_space<vmem>>, %arg3: memref<1x64xf32, #tpu.memory_space<vmem>>, %arg4: memref<1x64xf32, #tpu.memory_space<vmem>>, %arg5: memref<1x64xf32, #tpu.memory_space<vmem>>, %arg6: memref<64x64xf32, #tpu.memory_space<vmem>>, %arg7: memref<1x64xf32, #tpu.memory_space<vmem>>, %arg8: memref<1x64xf32, #tpu.memory_space<vmem>>, %arg9: memref<1x64xf32, #tpu.memory_space<vmem>>, %arg10: memref<64x16xf32, #tpu.memory_space<vmem>>, %arg11: memref<1x16xf32, #tpu.memory_space<vmem>>, %arg12: memref<8x16xf32, #tpu.memory_space<vmem>>) attributes {dimension_semantics = [#tpu.dimension_semantics<parallel>], iteration_bounds = array<i64: 2>, scalar_prefetch = 0 : i64, scratch_operands = 0 : i64, tpu.core_type = #tpu.core_type<tc>, window_params = [{transform_indices = @transform_0, window_bounds = array<i64: 8, 32>}, {pipeline_mode = #tpu.pipeline_mode<synchronous>, transform_indices = @transform_1, window_bounds = array<i64: 32, 64>}, {pipeline_mode = #tpu.pipeline_mode<synchronous>, transform_indices = @transform_2, window_bounds = array<i64: 1, 64>}, {pipeline_mode = #tpu.pipeline_mode<synchronous>, transform_indices = @transform_3, window_bounds = array<i64: 1, 64>}, {pipeline_mode = #tpu.pipeline_mode<synchronous>, transform_indices = @transform_4, window_bounds = array<i64: 1, 64>}, {pipeline_mode = #tpu.pipeline_mode<synchronous>, transform_indices = @transform_5, window_bounds = array<i64: 64, 64>}, {pipeline_mode = #tpu.pipeline_mode<synchronous>, transform_indices = @transform_6, window_bounds = array<i64: 1, 64>}, {pipeline_mode = #tpu.pipeline_mode<synchronous>, transform_indices = @transform_7, window_bounds = array<i64: 1, 64>}, {pipeline_mode = #tpu.pipeline_mode<synchronous>, transform_indices = @transform_8, window_bounds = array<i64: 1, 64>}, {pipeline_mode = #tpu.pipeline_mode<synchronous>, transform_indices = @transform_9, window_bounds = array<i64: 64, 16>}, {pipeline_mode = #tpu.pipeline_mode<synchronous>, transform_indices = @transform_10, window_bounds = array<i64: 1, 16>}, {transform_indices = @transform_11, window_bounds = array<i64: 8, 16>}]} {
    %c0 = arith.constant 0 : index
    %c0_0 = arith.constant 0 : index
    %0 = vector.load %arg1[%c0, %c0_0] : memref<8x32xf32, #tpu.memory_space<vmem>>, vector<8x32xf32>
    %c0_1 = arith.constant 0 : index
    %c0_2 = arith.constant 0 : index
    %1 = vector.load %arg2[%c0_1, %c0_2] : memref<32x64xf32, #tpu.memory_space<vmem>>, vector<32x64xf32>
    %c0_3 = arith.constant 0 : index
    %c0_4 = arith.constant 0 : index
    %2 = vector.load %arg3[%c0_3, %c0_4] : memref<1x64xf32, #tpu.memory_space<vmem>>, vector<1x64xf32>
    %cst = arith.constant dense<0.000000e+00> : vector<8x64xf32>
    %3 = tpu.matmul %0, %1, %cst {dimension_numbers = #tpu.dot_dimension_numbers<[1], [0], [0], [1], [0, 0, 1, 1], [], []>} : vector<8x32xf32>, vector<32x64xf32>, vector<8x64xf32> -> vector<8x64xf32>
    %4 = vector.broadcast %2 : vector<1x64xf32> to vector<8x64xf32>
    %5 = arith.addf %3, %4 : vector<8x64xf32>
    %c0_5 = arith.constant 0 : index
    %c0_6 = arith.constant 0 : index
    %6 = vector.load %arg4[%c0_5, %c0_6] : memref<1x64xf32, #tpu.memory_space<vmem>>, vector<1x64xf32>
    %c0_7 = arith.constant 0 : index
    %c0_8 = arith.constant 0 : index
    %7 = vector.load %arg5[%c0_7, %c0_8] : memref<1x64xf32, #tpu.memory_space<vmem>>, vector<1x64xf32>
    %cst_9 = arith.constant dense<0.000000e+00> : vector<8xf32>
    %8 = vector.multi_reduction <add>, %5, %cst_9 [1] : vector<8x64xf32> to vector<8xf32>
    %9 = vector.shape_cast %8 : vector<8xf32> to vector<8x1xf32>
    %cst_10 = arith.constant 6.400000e+01 : f32
    %10 = vector.broadcast %cst_10 : f32 to vector<8x1xf32>
    %11 = arith.divf %9, %10 : vector<8x1xf32>
    %12 = vector.broadcast %11 : vector<8x1xf32> to vector<8x64xf32>
    %13 = arith.subf %5, %12 : vector<8x64xf32>
    %14 = arith.mulf %13, %13 : vector<8x64xf32>
    %cst_11 = arith.constant dense<0.000000e+00> : vector<8xf32>
    %15 = vector.multi_reduction <add>, %14, %cst_11 [1] : vector<8x64xf32> to vector<8xf32>
    %16 = vector.shape_cast %15 : vector<8xf32> to vector<8x1xf32>
    %cst_12 = arith.constant 6.400000e+01 : f32
    %17 = vector.broadcast %cst_12 : f32 to vector<8x1xf32>
    %18 = arith.divf %16, %17 : vector<8x1xf32>
    %cst_13 = arith.constant 9.99999974E-6 : f32
    %19 = vector.broadcast %cst_13 : f32 to vector<8x1xf32>
    %20 = arith.addf %18, %19 : vector<8x1xf32>
    %21 = math.rsqrt %20 : vector<8x1xf32>
    %22 = vector.broadcast %21 : vector<8x1xf32> to vector<8x64xf32>
    %23 = arith.mulf %13, %22 : vector<8x64xf32>
    %24 = vector.broadcast %6 : vector<1x64xf32> to vector<8x64xf32>
    %25 = arith.mulf %23, %24 : vector<8x64xf32>
    %26 = vector.broadcast %7 : vector<1x64xf32> to vector<8x64xf32>
    %27 = arith.addf %25, %26 : vector<8x64xf32>
    %cst_14 = arith.constant 0.000000e+00 : f32
    %28 = vector.broadcast %cst_14 : f32 to vector<8x64xf32>
    %29 = arith.maximumf %27, %28 : vector<8x64xf32>
    %c0_15 = arith.constant 0 : index
    %c0_16 = arith.constant 0 : index
    %30 = vector.load %arg6[%c0_15, %c0_16] : memref<64x64xf32, #tpu.memory_space<vmem>>, vector<64x64xf32>
    %c0_17 = arith.constant 0 : index
    %c0_18 = arith.constant 0 : index
    %31 = vector.load %arg7[%c0_17, %c0_18] : memref<1x64xf32, #tpu.memory_space<vmem>>, vector<1x64xf32>
    %cst_19 = arith.constant dense<0.000000e+00> : vector<8x64xf32>
    %32 = tpu.matmul %29, %30, %cst_19 {dimension_numbers = #tpu.dot_dimension_numbers<[1], [0], [0], [1], [0, 0, 1, 1], [], []>} : vector<8x64xf32>, vector<64x64xf32>, vector<8x64xf32> -> vector<8x64xf32>
    %33 = vector.broadcast %31 : vector<1x64xf32> to vector<8x64xf32>
    %34 = arith.addf %32, %33 : vector<8x64xf32>
    %c0_20 = arith.constant 0 : index
    %c0_21 = arith.constant 0 : index
    %35 = vector.load %arg8[%c0_20, %c0_21] : memref<1x64xf32, #tpu.memory_space<vmem>>, vector<1x64xf32>
    %c0_22 = arith.constant 0 : index
    %c0_23 = arith.constant 0 : index
    %36 = vector.load %arg9[%c0_22, %c0_23] : memref<1x64xf32, #tpu.memory_space<vmem>>, vector<1x64xf32>
    %cst_24 = arith.constant dense<0.000000e+00> : vector<8xf32>
    %37 = vector.multi_reduction <add>, %34, %cst_24 [1] : vector<8x64xf32> to vector<8xf32>
    %38 = vector.shape_cast %37 : vector<8xf32> to vector<8x1xf32>
    %cst_25 = arith.constant 6.400000e+01 : f32
    %39 = vector.broadcast %cst_25 : f32 to vector<8x1xf32>
    %40 = arith.divf %38, %39 : vector<8x1xf32>
    %41 = vector.broadcast %40 : vector<8x1xf32> to vector<8x64xf32>
    %42 = arith.subf %34, %41 : vector<8x64xf32>
    %43 = arith.mulf %42, %42 : vector<8x64xf32>
    %cst_26 = arith.constant dense<0.000000e+00> : vector<8xf32>
    %44 = vector.multi_reduction <add>, %43, %cst_26 [1] : vector<8x64xf32> to vector<8xf32>
    %45 = vector.shape_cast %44 : vector<8xf32> to vector<8x1xf32>
    %cst_27 = arith.constant 6.400000e+01 : f32
    %46 = vector.broadcast %cst_27 : f32 to vector<8x1xf32>
    %47 = arith.divf %45, %46 : vector<8x1xf32>
    %cst_28 = arith.constant 9.99999974E-6 : f32
    %48 = vector.broadcast %cst_28 : f32 to vector<8x1xf32>
    %49 = arith.addf %47, %48 : vector<8x1xf32>
    %50 = math.rsqrt %49 : vector<8x1xf32>
    %51 = vector.broadcast %50 : vector<8x1xf32> to vector<8x64xf32>
    %52 = arith.mulf %42, %51 : vector<8x64xf32>
    %53 = vector.broadcast %35 : vector<1x64xf32> to vector<8x64xf32>
    %54 = arith.mulf %52, %53 : vector<8x64xf32>
    %55 = vector.broadcast %36 : vector<1x64xf32> to vector<8x64xf32>
    %56 = arith.addf %54, %55 : vector<8x64xf32>
    %cst_29 = arith.constant 0.000000e+00 : f32
    %57 = vector.broadcast %cst_29 : f32 to vector<8x64xf32>
    %58 = arith.maximumf %56, %57 : vector<8x64xf32>
    %c0_30 = arith.constant 0 : index
    %c0_31 = arith.constant 0 : index
    %59 = vector.load %arg10[%c0_30, %c0_31] : memref<64x16xf32, #tpu.memory_space<vmem>>, vector<64x16xf32>
    %c0_32 = arith.constant 0 : index
    %c0_33 = arith.constant 0 : index
    %60 = vector.load %arg11[%c0_32, %c0_33] : memref<1x16xf32, #tpu.memory_space<vmem>>, vector<1x16xf32>
    %cst_34 = arith.constant dense<0.000000e+00> : vector<8x16xf32>
    %61 = tpu.matmul %58, %59, %cst_34 {dimension_numbers = #tpu.dot_dimension_numbers<[1], [0], [0], [1], [0, 0, 1, 1], [], []>} : vector<8x64xf32>, vector<64x16xf32>, vector<8x16xf32> -> vector<8x16xf32>
    %62 = vector.broadcast %60 : vector<1x16xf32> to vector<8x16xf32>
    %63 = arith.addf %61, %62 : vector<8x16xf32>
    %c0_35 = arith.constant 0 : index
    %c0_36 = arith.constant 0 : index
    %64 = vector.load %arg12[%c0_35, %c0_36] : memref<8x16xf32, #tpu.memory_space<vmem>>, vector<8x16xf32>
    tpu.vector_store %arg12[%c0_35, %c0_36], %63 {strides = array<i32>} : memref<8x16xf32, #tpu.memory_space<vmem>>, vector<8x16xf32>,
    return
  }
  func.func @transform_0(%arg0: i32) -> (i32, i32) {
    %c0_i32 = arith.constant 0 : i32
    %c0_i32_0 = arith.constant 0 : i32
    return %arg0, %c0_i32 : i32, i32
  }
  func.func @transform_1(%arg0: i32) -> (i32, i32) {
    %c0_i32 = arith.constant 0 : i32
    %c0_i32_0 = arith.constant 0 : i32
    %c0_i32_1 = arith.constant 0 : i32
    return %c0_i32, %c0_i32_0 : i32, i32
  }
  func.func @transform_2(%arg0: i32) -> (i32, i32) {
    %c0_i32 = arith.constant 0 : i32
    %c0_i32_0 = arith.constant 0 : i32
    %c0_i32_1 = arith.constant 0 : i32
    return %c0_i32, %c0_i32_0 : i32, i32
  }
  func.func @transform_3(%arg0: i32) -> (i32, i32) {
    %c0_i32 = arith.constant 0 : i32
    %c0_i32_0 = arith.constant 0 : i32
    %c0_i32_1 = arith.constant 0 : i32
    return %c0_i32, %c0_i32_0 : i32, i32
  }
  func.func @transform_4(%arg0: i32) -> (i32, i32) {
    %c0_i32 = arith.constant 0 : i32
    %c0_i32_0 = arith.constant 0 : i32
    %c0_i32_1 = arith.constant 0 : i32
    return %c0_i32, %c0_i32_0 : i32, i32
  }
  func.func @transform_5(%arg0: i32) -> (i32, i32) {
    %c0_i32 = arith.constant 0 : i32
    %c0_i32_0 = arith.constant 0 : i32
    %c0_i32_1 = arith.constant 0 : i32
    return %c0_i32, %c0_i32_0 : i32, i32
  }
  func.func @transform_6(%arg0: i32) -> (i32, i32) {
    %c0_i32 = arith.constant 0 : i32
    %c0_i32_0 = arith.constant 0 : i32
    %c0_i32_1 = arith.constant 0 : i32
    return %c0_i32, %c0_i32_0 : i32, i32
  }
  func.func @transform_7(%arg0: i32) -> (i32, i32) {
    %c0_i32 = arith.constant 0 : i32
    %c0_i32_0 = arith.constant 0 : i32
    %c0_i32_1 = arith.constant 0 : i32
    return %c0_i32, %c0_i32_0 : i32, i32
  }
  func.func @transform_8(%arg0: i32) -> (i32, i32) {
    %c0_i32 = arith.constant 0 : i32
    %c0_i32_0 = arith.constant 0 : i32
    %c0_i32_1 = arith.constant 0 : i32
    return %c0_i32, %c0_i32_0 : i32, i32
  }
  func.func @transform_9(%arg0: i32) -> (i32, i32) {
    %c0_i32 = arith.constant 0 : i32
    %c0_i32_0 = arith.constant 0 : i32
    %c0_i32_1 = arith.constant 0 : i32
    return %c0_i32, %c0_i32_0 : i32, i32
  }
  func.func @transform_10(%arg0: i32) -> (i32, i32) {
    %c0_i32 = arith.constant 0 : i32
    %c0_i32_0 = arith.constant 0 : i32
    %c0_i32_1 = arith.constant 0 : i32
    return %c0_i32, %c0_i32_0 : i32, i32
  }
  func.func @transform_11(%arg0: i32) -> (i32, i32) {
    %c0_i32 = arith.constant 0 : i32
    %c0_i32_0 = arith.constant 0 : i32
    return %arg0, %c0_i32 : i32, i32
  }
}

module attributes {stable_mosaic.version = 11 : i64} {
  func.func @kernel(%arg0: i32, %arg1: memref<8x32xf32, #tpu.memory_space<vmem>>, %arg2: memref<32x64xf32, #tpu.memory_space<vmem>>, %arg3: memref<1x64xf32, #tpu.memory_space<vmem>>, %arg4: memref<1x64xf32, #tpu.memory_space<vmem>>, %arg5: memref<1x64xf32, #tpu.memory_space<vmem>>, %arg6: memref<64x64xf32, #tpu.memory_space<vmem>>, %arg7: memref<1x64xf32, #tpu.memory_space<vmem>>, %arg8: memref<1x64xf32, #tpu.memory_space<vmem>>, %arg9: memref<1x64xf32, #tpu.memory_space<vmem>>, %arg10: memref<64x16xf32, #tpu.memory_space<vmem>>, %arg11: memref<1x16xf32, #tpu.memory_space<vmem>>, %arg12: memref<8x16xf32, #tpu.memory_space<vmem>>) attributes {dimension_semantics = [#tpu.dimension_semantics<parallel>], iteration_bounds = array<i64: 2>, scalar_prefetch = 0 : i64, scratch_operands = 0 : i64, tpu.core_type = #tpu.core_type<tc>, window_params = [{transform_indices = @transform_0, window_bounds = array<i64: 8, 32>}, {pipeline_mode = #tpu.pipeline_mode<synchronous>, transform_indices = @transform_1, window_bounds = array<i64: 32, 64>}, {pipeline_mode = #tpu.pipeline_mode<synchronous>, transform_indices = @transform_2, window_bounds = array<i64: 1, 64>}, {pipeline_mode = #tpu.pipeline_mode<synchronous>, transform_indices = @transform_3, window_bounds = array<i64: 1, 64>}, {pipeline_mode = #tpu.pipeline_mode<synchronous>, transform_indices = @transform_4, window_bounds = array<i64: 1, 64>}, {pipeline_mode = #tpu.pipeline_mode<synchronous>, transform_indices = @transform_5, window_bounds = array<i64: 64, 64>}, {pipeline_mode = #tpu.pipeline_mode<synchronous>, transform_indices = @transform_6, window_bounds = array<i64: 1, 64>}, {pipeline_mode = #tpu.pipeline_mode<synchronous>, transform_indices = @transform_7, window_bounds = array<i64: 1, 64>}, {pipeline_mode = #tpu.pipeline_mode<synchronous>, transform_indices = @transform_8, window_bounds = array<i64: 1, 64>}, {pipeline_mode = #tpu.pipeline_mode<synchronous>, transform_indices = @transform_9, window_bounds = array<i64: 64, 16>}, {pipeline_mode = #tpu.pipeline_mode<synchronous>, transform_indices = @transform_10, window_bounds = array<i64: 1, 16>}, {transform_indices = @transform_11, window_bounds = array<i64: 8, 16>}]} {
    %c0 = arith.constant 0 : index
    %c0_0 = arith.constant 0 : index
    %0 = vector.load %arg1[%c0, %c0_0] : memref<8x32xf32, #tpu.memory_space<vmem>>, vector<8x32xf32>
    %c0_1 = arith.constant 0 : index
    %c0_2 = arith.constant 0 : index
    %1 = vector.load %arg2[%c0_1, %c0_2] : memref<32x64xf32, #tpu.memory_space<vmem>>, vector<32x64xf32>
    %c0_3 = arith.constant 0 : index
    %c0_4 = arith.constant 0 : index
    %2 = vector.load %arg3[%c0_3, %c0_4] : memref<1x64xf32, #tpu.memory_space<vmem>>, vector<1x64xf32>
    %cst = arith.constant dense<0.000000e+00> : vector<8x64xf32>
    %3 = tpu.matmul %0, %1, %cst {dimension_numbers = #tpu.dot_dimension_numbers<[1], [0], [0], [1], [0, 0, 1, 1], [], []>} : vector<8x32xf32>, vector<32x64xf32>, vector<8x64xf32> -> vector<8x64xf32>
    %4 = vector.broadcast %2 : vector<1x64xf32> to vector<8x64xf32>
    %5 = arith.addf %3, %4 : vector<8x64xf32>
    %c0_5 = arith.constant 0 : index
    %c0_6 = arith.constant 0 : index
    %6 = vector.load %arg4[%c0_5, %c0_6] : memref<1x64xf32, #tpu.memory_space<vmem>>, vector<1x64xf32>
    %c0_7 = arith.constant 0 : index
    %c0_8 = arith.constant 0 : index
    %7 = vector.load %arg5[%c0_7, %c0_8] : memref<1x64xf32, #tpu.memory_space<vmem>>, vector<1x64xf32>
    %cst_9 = arith.constant dense<0.000000e+00> : vector<8xf32>
    %8 = vector.multi_reduction <add>, %5, %cst_9 [1] : vector<8x64xf32> to vector<8xf32>
    %9 = vector.shape_cast %8 : vector<8xf32> to vector<8x1xf32>
    %cst_10 = arith.constant 6.400000e+01 : f32
    %10 = vector.broadcast %cst_10 : f32 to vector<8x1xf32>
    %11 = arith.divf %9, %10 : vector<8x1xf32>
    %12 = vector.broadcast %11 : vector<8x1xf32> to vector<8x64xf32>
    %13 = arith.subf %5, %12 : vector<8x64xf32>
    %14 = arith.mulf %13, %13 : vector<8x64xf32>
    %cst_11 = arith.constant dense<0.000000e+00> : vector<8xf32>
    %15 = vector.multi_reduction <add>, %14, %cst_11 [1] : vector<8x64xf32> to vector<8xf32>
    %16 = vector.shape_cast %15 : vector<8xf32> to vector<8x1xf32>
    %cst_12 = arith.constant 6.400000e+01 : f32
    %17 = vector.broadcast %cst_12 : f32 to vector<8x1xf32>
    %18 = arith.divf %16, %17 : vector<8x1xf32>
    %cst_13 = arith.constant 9.99999974E-6 : f32
    %19 = vector.broadcast %cst_13 : f32 to vector<8x1xf32>
    %20 = arith.addf %18, %19 : vector<8x1xf32>
    %21 = math.rsqrt %20 : vector<8x1xf32>
    %22 = vector.broadcast %21 : vector<8x1xf32> to vector<8x64xf32>
    %23 = arith.mulf %13, %22 : vector<8x64xf32>
    %24 = vector.broadcast %6 : vector<1x64xf32> to vector<8x64xf32>
    %25 = arith.mulf %23, %24 : vector<8x64xf32>
    %26 = vector.broadcast %7 : vector<1x64xf32> to vector<8x64xf32>
    %27 = arith.addf %25, %26 : vector<8x64xf32>
    %cst_14 = arith.constant 0.000000e+00 : f32
    %28 = vector.broadcast %cst_14 : f32 to vector<8x64xf32>
    %29 = arith.maximumf %27, %28 : vector<8x64xf32>
    %c0_15 = arith.constant 0 : index
    %c0_16 = arith.constant 0 : index
    %30 = vector.load %arg6[%c0_15, %c0_16] : memref<64x64xf32, #tpu.memory_space<vmem>>, vector<64x64xf32>
    %c0_17 = arith.constant 0 : index
    %c0_18 = arith.constant 0 : index
    %31 = vector.load %arg7[%c0_17, %c0_18] : memref<1x64xf32, #tpu.memory_space<vmem>>, vector<1x64xf32>
    %cst_19 = arith.constant dense<0.000000e+00> : vector<8x64xf32>
    %32 = tpu.matmul %29, %30, %cst_19 {dimension_numbers = #tpu.dot_dimension_numbers<[1], [0], [0], [1], [0, 0, 1, 1], [], []>} : vector<8x64xf32>, vector<64x64xf32>, vector<8x64xf32> -> vector<8x64xf32>
    %33 = vector.broadcast %31 : vector<1x64xf32> to vector<8x64xf32>
    %34 = arith.addf %32, %33 : vector<8x64xf32>
    %c0_20 = arith.constant 0 : index
    %c0_21 = arith.constant 0 : index
    %35 = vector.load %arg8[%c0_20, %c0_21] : memref<1x64xf32, #tpu.memory_space<vmem>>, vector<1x64xf32>
    %c0_22 = arith.constant 0 : index
    %c0_23 = arith.constant 0 : index
    %36 = vector.load %arg9[%c0_22, %c0_23] : memref<1x64xf32, #tpu.memory_space<vmem>>, vector<1x64xf32>
    %cst_24 = arith.constant dense<0.000000e+00> : vector<8xf32>
    %37 = vector.multi_reduction <add>, %34, %cst_24 [1] : vector<8x64xf32> to vector<8xf32>
    %38 = vector.shape_cast %37 : vector<8xf32> to vector<8x1xf32>
    %cst_25 = arith.constant 6.400000e+01 : f32
    %39 = vector.broadcast %cst_25 : f32 to vector<8x1xf32>
    %40 = arith.divf %38, %39 : vector<8x1xf32>
    %41 = vector.broadcast %40 : vector<8x1xf32> to vector<8x64xf32>
    %42 = arith.subf %34, %41 : vector<8x64xf32>
    %43 = arith.mulf %42, %42 : vector<8x64xf32>
    %cst_26 = arith.constant dense<0.000000e+00> : vector<8xf32>
    %44 = vector.multi_reduction <add>, %43, %cst_26 [1] : vector<8x64xf32> to vector<8xf32>
    %45 = vector.shape_cast %44 : vector<8xf32> to vector<8x1xf32>
    %cst_27 = arith.constant 6.400000e+01 : f32
    %46 = vector.broadcast %cst_27 : f32 to vector<8x1xf32>
    %47 = arith.divf %45, %46 : vector<8x1xf32>
    %cst_28 = arith.constant 9.99999974E-6 : f32
    %48 = vector.broadcast %cst_28 : f32 to vector<8x1xf32>
    %49 = arith.addf %47, %48 : vector<8x1xf32>
    %50 = math.rsqrt %49 : vector<8x1xf32>
    %51 = vector.broadcast %50 : vector<8x1xf32> to vector<8x64xf32>
    %52 = arith.mulf %42, %51 : vector<8x64xf32>
    %53 = vector.broadcast %35 : vector<1x64xf32> to vector<8x64xf32>
    %54 = arith.mulf %52, %53 : vector<8x64xf32>
    %55 = vector.broadcast %36 : vector<1x64xf32> to vector<8x64xf32>
    %56 = arith.addf %54, %55 : vector<8x64xf32>
    %cst_29 = arith.constant 0.000000e+00 : f32
    %57 = vector.broadcast %cst_29 : f32 to vector<8x64xf32>
    %58 = arith.maximumf %56, %57 : vector<8x64xf32>
    %c0_30 = arith.constant 0 : index
    %c0_31 = arith.constant 0 : index
    %59 = vector.load %arg10[%c0_30, %c0_31] : memref<64x16xf32, #tpu.memory_space<vmem>>, vector<64x16xf32>
    %c0_32 = arith.constant 0 : index
    %c0_33 = arith.constant 0 : index
    %60 = vector.load %arg11[%c0_32, %c0_33] : memref<1x16xf32, #tpu.memory_space<vmem>>, vector<1x16xf32>
    %cst_34 = arith.constant dense<0.000000e+00> : vector<8x16xf32>
    %61 = tpu.matmul %58, %59, %cst_34 {dimension_numbers = #tpu.dot_dimension_numbers<[1], [0], [0], [1], [0, 0, 1, 1], [], []>} : vector<8x64xf32>, vector<64x16xf32>, vector<8x16xf32> -> vector<8x16xf32>
    %62 = vector.broadcast %60 : vector<1x16xf32> to vector<8x16xf32>
    %63 = arith.addf %61, %62 : vector<8x16xf32>
    %c0_35 = arith.constant 0 : index
    %c0_36 = arith.constant 0 : index
    %64 = vector.load %arg12[%c0_35, %c0_36] : memref<8x16xf32, #tpu.memory_space<vmem>>, vector<8x16xf32>
    tpu.vector_store %arg12[%c0_35, %c0_36], %63 {strides = array<i32>} : memref<8x16xf32, #tpu.memory_space<vmem>>, vector<8x16xf32>,
    return
  }
  func.func @transform_0(%arg0: i32) -> (i32, i32) {
    %c0_i32 = arith.constant 0 : i32
    %c0_i32_0 = arith.constant 0 : i32
    return %arg0, %c0_i32 : i32, i32
  }
  func.func @transform_1(%arg0: i32) -> (i32, i32) {
    %c0_i32 = arith.constant 0 : i32
    %c0_i32_0 = arith.constant 0 : i32
    %c0_i32_1 = arith.constant 0 : i32
    return %c0_i32, %c0_i32_0 : i32, i32
  }
  func.func @transform_2(%arg0: i32) -> (i32, i32) {
    %c0_i32 = arith.constant 0 : i32
    %c0_i32_0 = arith.constant 0 : i32
    %c0_i32_1 = arith.constant 0 : i32
    return %c0_i32, %c0_i32_0 : i32, i32
  }
  func.func @transform_3(%arg0: i32) -> (i32, i32) {
    %c0_i32 = arith.constant 0 : i32
    %c0_i32_0 = arith.constant 0 : i32
    %c0_i32_1 = arith.constant 0 : i32
    return %c0_i32, %c0_i32_0 : i32, i32
  }
  func.func @transform_4(%arg0: i32) -> (i32, i32) {
    %c0_i32 = arith.constant 0 : i32
    %c0_i32_0 = arith.constant 0 : i32
    %c0_i32_1 = arith.constant 0 : i32
    return %c0_i32, %c0_i32_0 : i32, i32
  }
  func.func @transform_5(%arg0: i32) -> (i32, i32) {
    %c0_i32 = arith.constant 0 : i32
    %c0_i32_0 = arith.constant 0 : i32
    %c0_i32_1 = arith.constant 0 : i32
    return %c0_i32, %c0_i32_0 : i32, i32
  }
  func.func @transform_6(%arg0: i32) -> (i32, i32) {
    %c0_i32 = arith.constant 0 : i32
    %c0_i32_0 = arith.constant 0 : i32
    %c0_i32_1 = arith.constant 0 : i32
    return %c0_i32, %c0_i32_0 : i32, i32
  }
  func.func @transform_7(%arg0: i32) -> (i32, i32) {
    %c0_i32 = arith.constant 0 : i32
    %c0_i32_0 = arith.constant 0 : i32
    %c0_i32_1 = arith.constant 0 : i32
    return %c0_i32, %c0_i32_0 : i32, i32
  }
  func.func @transform_8(%arg0: i32) -> (i32, i32) {
    %c0_i32 = arith.constant 0 : i32
    %c0_i32_0 = arith.constant 0 : i32
    %c0_i32_1 = arith.constant 0 : i32
    return %c0_i32, %c0_i32_0 : i32, i32
  }
  func.func @transform_9(%arg0: i32) -> (i32, i32) {
    %c0_i32 = arith.constant 0 : i32
    %c0_i32_0 = arith.constant 0 : i32
    %c0_i32_1 = arith.constant 0 : i32
    return %c0_i32, %c0_i32_0 : i32, i32
  }
  func.func @transform_10(%arg0: i32) -> (i32, i32) {
    %c0_i32 = arith.constant 0 : i32
    %c0_i32_0 = arith.constant 0 : i32
    %c0_i32_1 = arith.constant 0 : i32
    return %c0_i32, %c0_i32_0 : i32, i32
  }
  func.func @transform_11(%arg0: i32) -> (i32, i32) {
    %c0_i32 = arith.constant 0 : i32
    %c0_i32_0 = arith.constant 0 : i32
    return %arg0, %c0_i32 : i32, i32
  }
}

</mosaic_0001>

<llo_original>
// kernel: tpu_custom_call.1
$region0: #{tpu_custom_call.1}
  #allocation0 [shape = 'u32[]', space=smem, size = 0x4, offset = 0x4, fixed_abs, tag = 'smem constant byte address 0x4 - core index']
  #allocation1 [shape = 'u32[72,128]{1,0:T(1,128)}', space=vmem, size = 0x9000, scoped, tag = 'internal scratch']
  %s0 = inlined_call_operand.vmem [shape: f32[16,32], index: 0, kind: input, shape index: {}]
  %s1 = inlined_call_operand.hbm [shape: f32[32,64], index: 1, kind: input, shape index: {}]
  %s2 = inlined_call_operand.vmem [shape: f32[1,64], index: 2, kind: input, shape index: {}]
  %s3 = inlined_call_operand.vmem [shape: f32[1,64], index: 3, kind: input, shape index: {}]
  %s4 = inlined_call_operand.vmem [shape: f32[1,64], index: 4, kind: input, shape index: {}]
  %s5 = inlined_call_operand.vmem [shape: f32[64,64], index: 5, kind: input, shape index: {}]
  %s6 = inlined_call_operand.vmem [shape: f32[1,64], index: 6, kind: input, shape index: {}]
  %s7 = inlined_call_operand.vmem [shape: f32[1,64], index: 7, kind: input, shape index: {}]
  %s8 = inlined_call_operand.vmem [shape: f32[1,64], index: 8, kind: input, shape index: {}]
  %s9 = inlined_call_operand.vmem [shape: f32[64,16], index: 9, kind: input, shape index: {}]
  %s10 = inlined_call_operand.vmem [shape: f32[1,16], index: 10, kind: input, shape index: {}]
  %s11 = inlined_call_operand.hbm [shape: f32[16,16], index: 11, kind: output, shape index: {}]
  %s12 = sld [smem:[#allocation0]]
  $region81: #{tpu_custom_call.1} parent=0
    _
  %s14 = ssub.s32 1, %s12
  %s15 = scalar_select 0, %s14, %s12
  $region1: #{tpu_custom_call.1} parent=0
    #allocation2 [shape = 'u8[16384]{0}', space=vmem, size = 0x4000, scoped, tag = 'input window, operand 1, single buffered']
    #allocation3 [shape = 's32[2]{0}', space=sflag, size = 0x8, scoped, tag = 'scoped memory for tpu_custom_call.1']
    #allocation4 [shape = 's32[2]{0}', space=sflag, size = 0x8, scoped, tag = 'scoped memory for tpu_custom_call.1']
    #allocation5 [shape = 'u8[8192]{0}', space=vmem, size = 0x2000, scoped, tag = 'output window, operand 0']
    %16 = vsyncpa [#allocation3], 0
    %17 = vsyncpa [#allocation4], 0
    %s18 = scalar_lea.sflag [#allocation4], 1
    %19 = vsyncpa %s18, 0
    loop: start=0, step=1, limit=4
    $region2: #{tpu_custom_call.1} parent=1 // loop_pre_header
      _
    $region3: #{tpu_custom_call.1} parent=1 // loop_header
      %s21 = sphi 0, %s25
      %p22 = scmp.ge.s32.totalorder %s21, 4
      %s31 = sphi 0, %s33
      %s34 = sphi 0, %s31
      %s35 = sphi 0, %s34
      %s51 = sphi 0, %s35
      %s55 = sphi 0, %s55
      %s57 = sphi 0, %s55
      %s58 = sphi 0, %s57
      %s72 = sphi 0, %s58
      %s76 = sphi 0, %s76
      %s78 = sphi 0, %s76
      %s79 = sphi 0, %s78
      %s93 = sphi 0, %s79
      %s97 = sphi 0, %s97
      %s99 = sphi 0, %s97
      %s100 = sphi 0, %s99
      %s114 = sphi 0, %s100
      %s118 = sphi 0, %s118
      %s120 = sphi 0, %s118
      %s121 = sphi 0, %s120
      %s135 = sphi 0, %s121
      %s139 = sphi 0, %s139
      %s141 = sphi 0, %s139
      %s142 = sphi 0, %s141
      %s156 = sphi 0, %s142
      %s160 = sphi 0, %s160
      %s162 = sphi 0, %s160
      %s163 = sphi 0, %s162
      %s177 = sphi 0, %s163
      %s181 = sphi 0, %s181
      %s183 = sphi 0, %s181
      %s184 = sphi 0, %s183
      %s198 = sphi 0, %s184
      %s202 = sphi 0, %s202
      %s204 = sphi 0, %s202
      %s205 = sphi 0, %s204
      %s219 = sphi 0, %s205
      %s223 = sphi 0, %s223
      %s225 = sphi 0, %s223
      %s226 = sphi 0, %s225
      %s240 = sphi 0, %s226
      %s244 = sphi 0, %s244
      %s246 = sphi 0, %s244
      %s247 = sphi 0, %s246
      %s261 = sphi 0, %s247
      %s267 = sphi 0, %s269
      %s270 = sphi 0, %s267
      %s271 = sphi 0, %s270
      %s287 = sphi 0, %s271
    $region4: #{tpu_custom_call.1} parent=1 // loop_header_branch
      %24 = sbr.rel (%p22) target = $region8
    $region5: #{tpu_custom_call.1} parent=1 // loop_body
      %s26 = ssub.s32 %s21, 1
      %s27 = ssub.s32 %s21, 2
      %s28 = sadd.s32 %s21, 1
      %s29 = ssub.s32 %s21, %s28
      %p30 = scmp.eq.s32.totalorder %s29, 0
      %s32 = sadd.s32 %s31, 1
      %s33 = scalar_select %p30, %s31, %s32
      %p36 = pneg %p30
      %p37 = scmp.eq.s32.totalorder %s21, 1
      %p38 = por %p36, %p37
      %p39 = scmp.ne.s32.totalorder %s31, %s34
      %p40 = scmp.eq.s32.totalorder %s21, 0
      %p41 = por %p39, %p40
      %p42 = scmp.ne.s32.totalorder %s31, %s34
      %p43 = scmp.eq.s32.totalorder %s26, 1
      %p44 = por %p42, %p43
      %p45 = scmp.ne.s32.totalorder %s34, %s35
      %p46 = scmp.eq.s32.totalorder %s26, 0
      %p47 = por %p45, %p46
      %p48 = scmp.ne.s32.totalorder %s34, %s35
      %p49 = scmp.eq.s32.totalorder %s27, 1
      %p50 = por %p48, %p49
      %p52 = scmp.ne.s32.totalorder %s35, %s51
      %p53 = scmp.eq.s32.totalorder %s27, 0
      %p54 = por %p52, %p53
      %s56 = sadd.s32 %s55, 1
      %p59 = scmp.eq.s32.totalorder %s21, 1
      %p60 = scmp.ne.s32.totalorder %s55, %s57
      %p61 = scmp.eq.s32.totalorder %s21, 0
      %p62 = por %p60, %p61
      %p63 = scmp.ne.s32.totalorder %s55, %s57
      %p64 = scmp.eq.s32.totalorder %s26, 1
      %p65 = por %p63, %p64
      %p66 = scmp.ne.s32.totalorder %s57, %s58
      %p67 = scmp.eq.s32.totalorder %s26, 0
      %p68 = por %p66, %p67
      %p69 = scmp.ne.s32.totalorder %s57, %s58
      %p70 = scmp.eq.s32.totalorder %s27, 1
      %p71 = por %p69, %p70
      %p73 = scmp.ne.s32.totalorder %s58, %s72
      %p74 = scmp.eq.s32.totalorder %s27, 0
      %p75 = por %p73, %p74
      %s77 = sadd.s32 %s76, 1
      %p80 = scmp.eq.s32.totalorder %s21, 1
      %p81 = scmp.ne.s32.totalorder %s76, %s78
      %p82 = scmp.eq.s32.totalorder %s21, 0
      %p83 = por %p81, %p82
      %p84 = scmp.ne.s32.totalorder %s76, %s78
      %p85 = scmp.eq.s32.totalorder %s26, 1
      %p86 = por %p84, %p85
      %p87 = scmp.ne.s32.totalorder %s78, %s79
      %p88 = scmp.eq.s32.totalorder %s26, 0
      %p89 = por %p87, %p88
      %p90 = scmp.ne.s32.totalorder %s78, %s79
      %p91 = scmp.eq.s32.totalorder %s27, 1
      %p92 = por %p90, %p91
      %p94 = scmp.ne.s32.totalorder %s79, %s93
      %p95 = scmp.eq.s32.totalorder %s27, 0
      %p96 = por %p94, %p95
      %s98 = sadd.s32 %s97, 1
      %p101 = scmp.eq.s32.totalorder %s21, 1
      %p102 = scmp.ne.s32.totalorder %s97, %s99
      %p103 = scmp.eq.s32.totalorder %s21, 0
      %p104 = por %p102, %p103
      %p105 = scmp.ne.s32.totalorder %s97, %s99
      %p106 = scmp.eq.s32.totalorder %s26, 1
      %p107 = por %p105, %p106
      %p108 = scmp.ne.s32.totalorder %s99, %s100
      %p109 = scmp.eq.s32.totalorder %s26, 0
      %p110 = por %p108, %p109
      %p111 = scmp.ne.s32.totalorder %s99, %s100
      %p112 = scmp.eq.s32.totalorder %s27, 1
      %p113 = por %p111, %p112
      %p115 = scmp.ne.s32.totalorder %s100, %s114
      %p116 = scmp.eq.s32.totalorder %s27, 0
      %p117 = por %p115, %p116
      %s119 = sadd.s32 %s118, 1
      %p122 = scmp.eq.s32.totalorder %s21, 1
      %p123 = scmp.ne.s32.totalorder %s118, %s120
      %p124 = scmp.eq.s32.totalorder %s21, 0
      %p125 = por %p123, %p124
      %p126 = scmp.ne.s32.totalorder %s118, %s120
      %p127 = scmp.eq.s32.totalorder %s26, 1
      %p128 = por %p126, %p127
      %p129 = scmp.ne.s32.totalorder %s120, %s121
      %p130 = scmp.eq.s32.totalorder %s26, 0
      %p131 = por %p129, %p130
      %p132 = scmp.ne.s32.totalorder %s120, %s121
      %p133 = scmp.eq.s32.totalorder %s27, 1
      %p134 = por %p132, %p133
      %p136 = scmp.ne.s32.totalorder %s121, %s135
      %p137 = scmp.eq.s32.totalorder %s27, 0
      %p138 = por %p136, %p137
      %s140 = sadd.s32 %s139, 1
      %p143 = scmp.eq.s32.totalorder %s21, 1
      %p144 = scmp.ne.s32.totalorder %s139, %s141
      %p145 = scmp.eq.s32.totalorder %s21, 0
      %p146 = por %p144, %p145
      %p147 = scmp.ne.s32.totalorder %s139, %s141
      %p148 = scmp.eq.s32.totalorder %s26, 1
      %p149 = por %p147, %p148
      %p150 = scmp.ne.s32.totalorder %s141, %s142
      %p151 = scmp.eq.s32.totalorder %s26, 0
      %p152 = por %p150, %p151
      %p153 = scmp.ne.s32.totalorder %s141, %s142
      %p154 = scmp.eq.s32.totalorder %s27, 1
      %p155 = por %p153, %p154
      %p157 = scmp.ne.s32.totalorder %s142, %s156
      %p158 = scmp.eq.s32.totalorder %s27, 0
      %p159 = por %p157, %p158
      %s161 = sadd.s32 %s160, 1
      %p164 = scmp.eq.s32.totalorder %s21, 1
      %p165 = scmp.ne.s32.totalorder %s160, %s162
      %p166 = scmp.eq.s32.totalorder %s21, 0
      %p167 = por %p165, %p166
      %p168 = scmp.ne.s32.totalorder %s160, %s162
      %p169 = scmp.eq.s32.totalorder %s26, 1
      %p170 = por %p168, %p169
      %p171 = scmp.ne.s32.totalorder %s162, %s163
      %p172 = scmp.eq.s32.totalorder %s26, 0
      %p173 = por %p171, %p172
      %p174 = scmp.ne.s32.totalorder %s162, %s163
      %p175 = scmp.eq.s32.totalorder %s27, 1
      %p176 = por %p174, %p175
      %p178 = scmp.ne.s32.totalorder %s163, %s177
      %p179 = scmp.eq.s32.totalorder %s27, 0
      %p180 = por %p178, %p179
      %s182 = sadd.s32 %s181, 1
      %p185 = scmp.eq.s32.totalorder %s21, 1
      %p186 = scmp.ne.s32.totalorder %s181, %s183
      %p187 = scmp.eq.s32.totalorder %s21, 0
      %p188 = por %p186, %p187
      %p189 = scmp.ne.s32.totalorder %s181, %s183
      %p190 = scmp.eq.s32.totalorder %s26, 1
      %p191 = por %p189, %p190
      %p192 = scmp.ne.s32.totalorder %s183, %s184
      %p193 = scmp.eq.s32.totalorder %s26, 0
      %p194 = por %p192, %p193
      %p195 = scmp.ne.s32.totalorder %s183, %s184
      %p196 = scmp.eq.s32.totalorder %s27, 1
      %p197 = por %p195, %p196
      %p199 = scmp.ne.s32.totalorder %s184, %s198
      %p200 = scmp.eq.s32.totalorder %s27, 0
      %p201 = por %p199, %p200
      %s203 = sadd.s32 %s202, 1
      %p206 = scmp.eq.s32.totalorder %s21, 1
      %p207 = scmp.ne.s32.totalorder %s202, %s204
      %p208 = scmp.eq.s32.totalorder %s21, 0
      %p209 = por %p207, %p208
      %p210 = scmp.ne.s32.totalorder %s202, %s204
      %p211 = scmp.eq.s32.totalorder %s26, 1
      %p212 = por %p210, %p211
      %p213 = scmp.ne.s32.totalorder %s204, %s205
      %p214 = scmp.eq.s32.totalorder %s26, 0
      %p215 = por %p213, %p214
      %p216 = scmp.ne.s32.totalorder %s204, %s205
      %p217 = scmp.eq.s32.totalorder %s27, 1
      %p218 = por %p216, %p217
      %p220 = scmp.ne.s32.totalorder %s205, %s219
      %p221 = scmp.eq.s32.totalorder %s27, 0
      %p222 = por %p220, %p221
      %s224 = sadd.s32 %s223, 1
      %p227 = scmp.eq.s32.totalorder %s21, 1
      %p228 = scmp.ne.s32.totalorder %s223, %s225
      %p229 = scmp.eq.s32.totalorder %s21, 0
      %p230 = por %p228, %p229
      %p231 = scmp.ne.s32.totalorder %s223, %s225
      %p232 = scmp.eq.s32.totalorder %s26, 1
      %p233 = por %p231, %p232
      %p234 = scmp.ne.s32.totalorder %s225, %s226
      %p235 = scmp.eq.s32.totalorder %s26, 0
      %p236 = por %p234, %p235
      %p237 = scmp.ne.s32.totalorder %s225, %s226
      %p238 = scmp.eq.s32.totalorder %s27, 1
      %p239 = por %p237, %p238
      %p241 = scmp.ne.s32.totalorder %s226, %s240
      %p242 = scmp.eq.s32.totalorder %s27, 0
      %p243 = por %p241, %p242
      %s245 = sadd.s32 %s244, 1
      %p248 = scmp.eq.s32.totalorder %s21, 1
      %p249 = scmp.ne.s32.totalorder %s244, %s246
      %p250 = scmp.eq.s32.totalorder %s21, 0
      %p251 = por %p249, %p250
      %p252 = scmp.ne.s32.totalorder %s244, %s246
      %p253 = scmp.eq.s32.totalorder %s26, 1
      %p254 = por %p252, %p253
      %p255 = scmp.ne.s32.totalorder %s246, %s247
      %p256 = scmp.eq.s32.totalorder %s26, 0
      %p257 = por %p255, %p256
      %p258 = scmp.ne.s32.totalorder %s246, %s247
      %p259 = scmp.eq.s32.totalorder %s27, 1
      %p260 = por %p258, %p259
      %p262 = scmp.ne.s32.totalorder %s247, %s261
      %p263 = scmp.eq.s32.totalorder %s27, 0
      %p264 = por %p262, %p263
      %s265 = ssub.s32 %s21, %s28
      %p266 = scmp.eq.s32.totalorder %s265, 0
      %s268 = sadd.s32 %s267, 1
      %s269 = scalar_select %p266, %s267, %s268
      %p272 = pneg %p266
      %p273 = scmp.eq.s32.totalorder %s21, 1
      %p274 = por %p272, %p273
      %p275 = scmp.ne.s32.totalorder %s267, %s270
      %p276 = scmp.eq.s32.totalorder %s21, 0
      %p277 = por %p275, %p276
      %p278 = scmp.ne.s32.totalorder %s267, %s270
      %p279 = scmp.eq.s32.totalorder %s26, 1
      %p280 = por %p278, %p279
      %p281 = scmp.ne.s32.totalorder %s270, %s271
      %p282 = scmp.eq.s32.totalorder %s26, 0
      %p283 = por %p281, %p282
      %p284 = scmp.ne.s32.totalorder %s270, %s271
      %p285 = scmp.eq.s32.totalorder %s27, 1
      %p286 = por %p284, %p285
      %p288 = scmp.ne.s32.totalorder %s271, %s287
      %p289 = scmp.eq.s32.totalorder %s27, 0
      %p290 = por %p288, %p289
      %p291 = scmp.le.s32.totalorder 1, %s21
      %p292 = scmp.lt.s32.totalorder %s21, 3
      %p293 = pnand %p291, %p292
      %p294 = pneg %p293
      // Predicated region
      $region9: #{tpu_custom_call.1} parent=5 // pred_check
        _
      $region10: #{tpu_custom_call.1} parent=5 // pred_check_branch
        %296 = sbr.rel (%p293) target = $region12
      $region11: #{tpu_custom_call.1} parent=5 // pred_region
        %s297 = ssub.s32 %s21, 1
        // Predicated region
        $region13: #{tpu_custom_call.1} parent=11 // pred_check
          %p298 = pneg %p68
        $region14: #{tpu_custom_call.1} parent=11 // pred_check_branch
          %300 = sbr.rel (%p298) target = $region16
        $region15: #{tpu_custom_call.1} parent=11 // pred_region
          %302 = vsyncadd [#allocation3], 0
          %s303 = sshll.u32 %s1, 4
          %s304 = int_to_ptr.hbm [resolvable:$true] %s303
          %s305 = sshll.u32 [#allocation2], 4
          %s306 = int_to_ptr.vmem [resolvable:$true] %s305
          %311 = dma.hbm_to_vmem [thread:$0]  %s304, 512, %s306, [#allocation3], 128, 128, 8
        $region16: #{tpu_custom_call.1} parent=11 // pred_fallthru
          _
        // Predicated region
        $region17: #{tpu_custom_call.1} parent=11 // pred_check
          %p312 = pneg %p89
        $region18: #{tpu_custom_call.1} parent=11 // pred_check_branch
          %314 = sbr.rel (%p312) target = $region20
        $region19: #{tpu_custom_call.1} parent=11 // pred_region
          _
        $region20: #{tpu_custom_call.1} parent=11 // pred_fallthru
          _
        // Predicated region
        $region21: #{tpu_custom_call.1} parent=11 // pred_check
          %p315 = pneg %p110
        $region22: #{tpu_custom_call.1} parent=11 // pred_check_branch
          %317 = sbr.rel (%p315) target = $region24
        $region23: #{tpu_custom_call.1} parent=11 // pred_region
          _
        $region24: #{tpu_custom_call.1} parent=11 // pred_fallthru
          _
        // Predicated region
        $region25: #{tpu_custom_call.1} parent=11 // pred_check
          %p318 = pneg %p131
        $region26: #{tpu_custom_call.1} parent=11 // pred_check_branch
          %320 = sbr.rel (%p318) target = $region28
        $region27: #{tpu_custom_call.1} parent=11 // pred_region
          _
        $region28: #{tpu_custom_call.1} parent=11 // pred_fallthru
          _
        // Predicated region
        $region29: #{tpu_custom_call.1} parent=11 // pred_check
          %p321 = pneg %p152
        $region30: #{tpu_custom_call.1} parent=11 // pred_check_branch
          %323 = sbr.rel (%p321) target = $region32
        $region31: #{tpu_custom_call.1} parent=11 // pred_region
          _
        $region32: #{tpu_custom_call.1} parent=11 // pred_fallthru
          _
        // Predicated region
        $region33: #{tpu_custom_call.1} parent=11 // pred_check
          %p324 = pneg %p173
        $region34: #{tpu_custom_call.1} parent=11 // pred_check_branch
          %326 = sbr.rel (%p324) target = $region36
        $region35: #{tpu_custom_call.1} parent=11 // pred_region
          _
        $region36: #{tpu_custom_call.1} parent=11 // pred_fallthru
          _
        // Predicated region
        $region37: #{tpu_custom_call.1} parent=11 // pred_check
          %p327 = pneg %p194
        $region38: #{tpu_custom_call.1} parent=11 // pred_check_branch
          %329 = sbr.rel (%p327) target = $region40
        $region39: #{tpu_custom_call.1} parent=11 // pred_region
          _
        $region40: #{tpu_custom_call.1} parent=11 // pred_fallthru
          _
        // Predicated region
        $region41: #{tpu_custom_call.1} parent=11 // pred_check
          %p330 = pneg %p215
        $region42: #{tpu_custom_call.1} parent=11 // pred_check_branch
          %332 = sbr.rel (%p330) target = $region44
        $region43: #{tpu_custom_call.1} parent=11 // pred_region
          _
        $region44: #{tpu_custom_call.1} parent=11 // pred_fallthru
          _
        // Predicated region
        $region45: #{tpu_custom_call.1} parent=11 // pred_check
          %p333 = pneg %p236
        $region46: #{tpu_custom_call.1} parent=11 // pred_check_branch
          %335 = sbr.rel (%p333) target = $region48
        $region47: #{tpu_custom_call.1} parent=11 // pred_region
          _
        $region48: #{tpu_custom_call.1} parent=11 // pred_fallthru
          _
        // Predicated region
        $region49: #{tpu_custom_call.1} parent=11 // pred_check
          %p336 = pneg %p257
        $region50: #{tpu_custom_call.1} parent=11 // pred_check_branch
          %338 = sbr.rel (%p336) target = $region52
        $region51: #{tpu_custom_call.1} parent=11 // pred_region
          _
        $region52: #{tpu_custom_call.1} parent=11 // pred_fallthru
          _
      $region12: #{tpu_custom_call.1} parent=5 // pred_fallthru
        _
      %p339 = scmp.lt.s32.totalorder %s21, 2
      // Predicated region
      $region53: #{tpu_custom_call.1} parent=5 // pred_check
        %p340 = pneg %p339
      $region54: #{tpu_custom_call.1} parent=5 // pred_check_branch
        %342 = sbr.rel (%p340) target = $region56
      $region55: #{tpu_custom_call.1} parent=5 // pred_region
        // Predicated region
        $region57: #{tpu_custom_call.1} parent=55 // pred_check
          %p343 = pneg %p41
        $region58: #{tpu_custom_call.1} parent=55 // pred_check_branch
          %345 = sbr.rel (%p343) target = $region60
        $region59: #{tpu_custom_call.1} parent=55 // pred_region
          %p346 = scmp.lt.s32.totalorder %s21, 1
          %s347 = scalar_select %p346, %s21, 1
          %s348 = smul.addr %s347, 8
          %s349 = scalar_lea.vmem %s0, %s348
        $region60: #{tpu_custom_call.1} parent=55 // pred_fallthru
          _
      $region56: #{tpu_custom_call.1} parent=5 // pred_fallthru
        _
      %p350 = scmp.le.s32.totalorder 1, %s21
      %p351 = scmp.lt.s32.totalorder %s21, 3
      %p352 = pnand %p350, %p351
      %p353 = pneg %p352
      // Predicated region
      $region61: #{tpu_custom_call.1} parent=5 // pred_check
        _
      $region62: #{tpu_custom_call.1} parent=5 // pred_check_branch
        %355 = sbr.rel (%p352) target = $region64
      $region63: #{tpu_custom_call.1} parent=5 // pred_region
        %s356 = ssub.s32 %s21, 1
        // Predicated region
        $region65: #{tpu_custom_call.1} parent=63 // pred_check
          %p357 = pneg %p68
        $region66: #{tpu_custom_call.1} parent=63 // pred_check_branch
          %359 = sbr.rel (%p357) target = $region68
        $region67: #{tpu_custom_call.1} parent=63 // pred_region
          %361 = dma.done [#allocation3], 512
        $region68: #{tpu_custom_call.1} parent=63 // pred_fallthru
          _
        %p362 = scmp.lt.s32.totalorder %s26, 1
        %s363 = scalar_select %p362, %s26, 1
        %s364 = smul.addr %s363, 8
        %s365 = scalar_lea.vmem %s0, %s364
        %p366 = pneg %p47
        %p367 = pneg %p44
        %p368 = pneg %p68
        %p369 = pneg %p65
        %p370 = pneg %p89
        %p371 = pneg %p86
        %p372 = pneg %p110
        %p373 = pneg %p107
        %p374 = pneg %p131
        %p375 = pneg %p128
        %p376 = pneg %p152
        %p377 = pneg %p149
        %p378 = pneg %p173
        %p379 = pneg %p170
        %p380 = pneg %p194
        %p381 = pneg %p191
        %p382 = pneg %p215
        %p383 = pneg %p212
        %p384 = pneg %p236
        %p385 = pneg %p233
        %p386 = pneg %p257
        %p387 = pneg %p254
        %p388 = pneg %p283
        %p389 = pneg %p280
        %s390 = sand.u32 %s270, 1
        %s391 = scalar_lea.sflag [#allocation4], %s390
        %s392 = sand.u32 %s270, 1
        %s393 = smul.addr %s392, 8
        %s394 = scalar_lea.vmem [#allocation5], %s393
        %p395 = scmp.lt.s32.totalorder %s26, 1
        %s396 = scalar_select %p395, %s26, 1
        %s397 = smul.addr %s396, 8
        %s398 = scalar_lea.vmem %s0, %s397
        %v399 = vld [vmem:[%s398] sm:$0xff]
        %v400 = vld [vmem:[#allocation2] sm:$0xff]
        %v401 = vld [vmem:[#allocation2 + $0x8] sm:$0xff]
        %v402 = vld [vmem:[#allocation2 + $0x10] sm:$0xff]
        %v403 = vld [vmem:[#allocation2 + $0x18] sm:$0xff]
        %v404 = vld [vmem:[%s2] sm:$0x1]
        %v406 = vperm.slane %v404, 0
        %vm408 = vcmask 261120
        %v410 = vsel %vm408, %v399, 0
        %412 = vmatpush.msra.mxu0 0.0
        %413 = vmatpush.msra.mxu0 0.0
        %414 = vmatpush.msra.mxu0 0.0
        %415 = vmatpush.msra.mxu0 0.0
        %416 = vmatpush.msra.mxu0 0.0
        %417 = vmatpush.msra.mxu0 0.0
        %418 = vmatpush.msra.mxu0 0.0
        %419 = vmatpush.msra.mxu0 0.0
        %420 = vmatpush.msra.mxu0 0.0
        %421 = vmatpush.msra.mxu0 0.0
        %422 = vmatpush.msra.mxu0 0.0
        %423 = vmatpush.msra.mxu0 0.0
        %424 = vmatpush.msra.mxu0 %v403
        %425 = vmatpush.msra.mxu0 %v402
        %426 = vmatpush.msra.mxu0 %v401
        %427 = vmatpush.msra.mxu0 %v400
        %428 = vmatmul.f32.gmra.mxu0 %v410
        %v429 = vpop.f32.mrf.mxu0
        %v430 = vadd.f32 %v406, %v429
        %431 = vdwg.mxu0
        %v432 = vld [vmem:[%s3] sm:$0x1]
        %v433 = vld [vmem:[%s4] sm:$0x1]
        %vm434 = vcmask 523264
        %v435 = vsel %vm434, %v430, 0.0
        %436 = vadd.xlane.f32.xlu0 %v435
        %v437 = vpop.xlane.xlu0 %436
        %v438 = vrcp.pop 64.0
        %v439 = vmul.f32 64.0, %v438
        %v440 = vsub.f32 1.0, %v439
        %v441 = vmul.f32 %v438, %v440
        %v442 = vadd.f32 %v438, %v441
        %vm443 = vweird.f32 %v438
        %v444 = vsel %vm443, %v438, %v442
        %v445 = vmul.f32 %v437, %v444
        %v446 = vsub.f32 %v430, %v445
        %v447 = vmul.f32 %v446, %v446
        %v448 = vsel %vm434, %v447, 0.0
        %449 = vadd.xlane.f32.xlu0 %v448
        %v450 = vpop.xlane.xlu0 %449
        %v451 = vmul.f32 %v450, %v444
        %v452 = vadd.f32 %v451, 1e-05
        %v453 = vrsqrt.pop %v452
        %v454 = vmul.f32 %v453, %v452
        %v455 = vmul.f32 %v454, %v453
        %v456 = vmul.f32 0.5, %v455
        %v457 = vsub.f32 1.5, %v456
        %v458 = vmul.f32 %v453, %v457
        %vm459 = vweird.f32 %v452
        %vm460 = vweird.f32 %v453
        %vm461 = vmor %vm459, %vm460
        %v462 = vsel %vm461, %v453, %v458
        %v463 = vmul.f32 %v446, %v462
        %v465 = vperm.slane %v432, 0
        %v467 = vmul.f32 %v463, %v465
        %v469 = vperm.slane %v433, 0
        %v471 = vadd.f32 %v467, %v469
        %v472 = vmax.f32 %v471, 0.0
        %v473 = vld [vmem:[%s5] sm:$0xff]
        %v474 = vld [vmem:[%s5 + $0x8] sm:$0xff]
        %v475 = vld [vmem:[%s5 + $0x10] sm:$0xff]
        %v476 = vld [vmem:[%s5 + $0x18] sm:$0xff]
        %v477 = vld [vmem:[%s5 + $0x20] sm:$0xff]
        %v478 = vld [vmem:[%s5 + $0x28] sm:$0xff]
        %v479 = vld [vmem:[%s5 + $0x30] sm:$0xff]
        %v480 = vld [vmem:[%s5 + $0x38] sm:$0xff]
        %v481 = vld [vmem:[%s6] sm:$0x1]
        %v483 = vperm.slane %v481, 0
        %v486 = vsel %vm434, %v472, 0
        %488 = vmatpush.msra.mxu0 0.0
        %489 = vmatpush.msra.mxu0 0.0
        %490 = vmatpush.msra.mxu0 0.0
        %491 = vmatpush.msra.mxu0 0.0
        %492 = vmatpush.msra.mxu0 0.0
        %493 = vmatpush.msra.mxu0 0.0
        %494 = vmatpush.msra.mxu0 0.0
        %495 = vmatpush.msra.mxu0 0.0
        %496 = vmatpush.msra.mxu0 %v480
        %497 = vmatpush.msra.mxu0 %v479
        %498 = vmatpush.msra.mxu0 %v478
        %499 = vmatpush.msra.mxu0 %v477
        %500 = vmatpush.msra.mxu0 %v476
        %501 = vmatpush.msra.mxu0 %v475
        %502 = vmatpush.msra.mxu0 %v474
        %503 = vmatpush.msra.mxu0 %v473
        %504 = vmatmul.f32.gmra.mxu0 %v486
        %v505 = vpop.f32.mrf.mxu0
        %v506 = vadd.f32 %v483, %v505
        %507 = vdwg.mxu0
        %v508 = vld [vmem:[%s7] sm:$0x1]
        %v509 = vld [vmem:[%s8] sm:$0x1]
        %v510 = vsel %vm434, %v506, 0.0
        %511 = vadd.xlane.f32.xlu0 %v510
        %v512 = vpop.xlane.xlu0 %511
        %v513 = vmul.f32 %v512, %v444
        %v514 = vsub.f32 %v506, %v513
        %v515 = vmul.f32 %v514, %v514
        %v516 = vsel %vm434, %v515, 0.0
        %517 = vadd.xlane.f32.xlu0 %v516
        %v518 = vpop.xlane.xlu0 %517
        %v519 = vmul.f32 %v518, %v444
        %v520 = vadd.f32 %v519, 1e-05
        %v521 = vrsqrt.pop %v520
        %v522 = vmul.f32 %v521, %v520
        %v523 = vmul.f32 %v522, %v521
        %v524 = vmul.f32 0.5, %v523
        %v525 = vsub.f32 1.5, %v524
        %v526 = vmul.f32 %v521, %v525
        %vm527 = vweird.f32 %v520
        %vm528 = vweird.f32 %v521
        %vm529 = vmor %vm527, %vm528
        %v530 = vsel %vm529, %v521, %v526
        %v531 = vmul.f32 %v514, %v530
        %v533 = vperm.slane %v508, 0
        %v535 = vmul.f32 %v531, %v533
        %v537 = vperm.slane %v509, 0
        %v539 = vadd.f32 %v535, %v537
        %v540 = vmax.f32 %v539, 0.0
        %v541 = vld [vmem:[%s9] sm:$0xff]
        %v542 = vld [vmem:[%s9 + $0x8] sm:$0xff]
        %v543 = vld [vmem:[%s9 + $0x10] sm:$0xff]
        %v544 = vld [vmem:[%s9 + $0x18] sm:$0xff]
        %v545 = vld [vmem:[%s9 + $0x20] sm:$0xff]
        %v546 = vld [vmem:[%s9 + $0x28] sm:$0xff]
        %v547 = vld [vmem:[%s9 + $0x30] sm:$0xff]
        %v548 = vld [vmem:[%s9 + $0x38] sm:$0xff]
        %v549 = vld [vmem:[%s10] sm:$0x1]
        %v551 = vperm.slane %v549, 0
        %v554 = vsel %vm434, %v540, 0
        %556 = vmatpush.msra.mxu0 0.0
        %557 = vmatpush.msra.mxu0 0.0
        %558 = vmatpush.msra.mxu0 0.0
        %559 = vmatpush.msra.mxu0 0.0
        %560 = vmatpush.msra.mxu0 0.0
        %561 = vmatpush.msra.mxu0 0.0
        %562 = vmatpush.msra.mxu0 0.0
        %563 = vmatpush.msra.mxu0 0.0
        %564 = vmatpush.msra.mxu0 %v548
        %565 = vmatpush.msra.mxu0 %v547
        %566 = vmatpush.msra.mxu0 %v546
        %567 = vmatpush.msra.mxu0 %v545
        %568 = vmatpush.msra.mxu0 %v544
        %569 = vmatpush.msra.mxu0 %v543
        %570 = vmatpush.msra.mxu0 %v542
        %571 = vmatpush.msra.mxu0 %v541
        %572 = vmatmul.f32.gmra.mxu0 %v554
        %v573 = vpop.f32.mrf.mxu0
        %v574 = vadd.f32 %v551, %v573
        %575 = vdwg.mxu0
        %vm576 = vcmask 130048
        %577 = vst.msk [vmem:[%s394] sm:$0xff] %vm576, %v574
        %s578 = sand.u32 %s270, 1
        %s579 = scalar_lea.sflag [#allocation4], %s578
        %s580 = sand.u32 %s270, 1
        %s581 = smul.addr %s580, 8
        %s582 = scalar_lea.vmem [#allocation5], %s581
        // Predicated region
        $region69: #{tpu_custom_call.1} parent=63 // pred_check
          %p583 = pneg %p280
        $region70: #{tpu_custom_call.1} parent=63 // pred_check_branch
          %585 = sbr.rel (%p583) target = $region72
        $region71: #{tpu_custom_call.1} parent=63 // pred_region
          %587 = vsyncadd %s579, 0
          %s588 = smul.addr %s26, 8
          %s589 = scalar_lea.hbm %s11, %s588
          %s591 = sshll.u32 %s582, 4
          %s592 = int_to_ptr.vmem [resolvable:$true] %s591
          %s593 = sshll.u32 %s589, 4
          %s594 = int_to_ptr.hbm [resolvable:$true] %s593
          %596 = dma.vmem_to_hbm [thread:$0]  %s592, 128, %s594, %s579
        $region72: #{tpu_custom_call.1} parent=63 // pred_fallthru
          _
      $region64: #{tpu_custom_call.1} parent=5 // pred_fallthru
        _
      %p597 = scmp.le.s32.totalorder 2, %s21
      // Predicated region
      $region73: #{tpu_custom_call.1} parent=5 // pred_check
        %p598 = pneg %p597
      $region74: #{tpu_custom_call.1} parent=5 // pred_check_branch
        %600 = sbr.rel (%p598) target = $region76
      $region75: #{tpu_custom_call.1} parent=5 // pred_region
        %s601 = ssub.s32 %s21, 2
        // Predicated region
        $region77: #{tpu_custom_call.1} parent=75 // pred_check
          %p602 = pneg %p286
        $region78: #{tpu_custom_call.1} parent=75 // pred_check_branch
          %604 = sbr.rel (%p602) target = $region80
        $region79: #{tpu_custom_call.1} parent=75 // pred_region
          %s605 = sand.u32 %s271, 1
          %s606 = scalar_lea.sflag [#allocation4], %s605
          %s607 = sand.u32 %s271, 1
          %s608 = smul.addr %s607, 8
          %s609 = scalar_lea.vmem [#allocation5], %s608
          %611 = dma.done %s606, 128
        $region80: #{tpu_custom_call.1} parent=75 // pred_fallthru
          _
      $region76: #{tpu_custom_call.1} parent=5 // pred_fallthru
        _
    $region6: #{tpu_custom_call.1} parent=1 // loop_footer
      %s25 = sadd.s32 1, %s21
    $region7: #{tpu_custom_call.1} parent=1 // loop_footer_branch
      %20 = sbr.rel target = $region3
    $region8: #{tpu_custom_call.1} parent=1 // loop_exit
      _
    %612 = vsyncpa [#allocation3], 1
    %s613 = scalar_lea.sflag [#allocation3], 1
    %614 = vsyncpa %s613, 1
    %615 = vsyncpa [#allocation4], 1
    %s616 = scalar_lea.sflag [#allocation4], 1
    %617 = vsyncpa %s616, 1

// kernel: tpu_custom_call.1
$region0: #{tpu_custom_call.1}
  #allocation0 [shape = 'u32[]', space=smem, size = 0x4, offset = 0x4, fixed_abs, tag = 'smem constant byte address 0x4 - core index']
  #allocation1 [shape = 'u32[72,128]{1,0:T(1,128)}', space=vmem, size = 0x9000, scoped, tag = 'internal scratch']
  %s0 = inlined_call_operand.vmem [shape: f32[16,32], index: 0, kind: input, shape index: {}]
  %s1 = inlined_call_operand.hbm [shape: f32[32,64], index: 1, kind: input, shape index: {}]
  %s2 = inlined_call_operand.vmem [shape: f32[1,64], index: 2, kind: input, shape index: {}]
  %s3 = inlined_call_operand.vmem [shape: f32[1,64], index: 3, kind: input, shape index: {}]
  %s4 = inlined_call_operand.vmem [shape: f32[1,64], index: 4, kind: input, shape index: {}]
  %s5 = inlined_call_operand.vmem [shape: f32[64,64], index: 5, kind: input, shape index: {}]
  %s6 = inlined_call_operand.vmem [shape: f32[1,64], index: 6, kind: input, shape index: {}]
  %s7 = inlined_call_operand.vmem [shape: f32[1,64], index: 7, kind: input, shape index: {}]
  %s8 = inlined_call_operand.vmem [shape: f32[1,64], index: 8, kind: input, shape index: {}]
  %s9 = inlined_call_operand.vmem [shape: f32[64,16], index: 9, kind: input, shape index: {}]
  %s10 = inlined_call_operand.vmem [shape: f32[1,16], index: 10, kind: input, shape index: {}]
  %s11 = inlined_call_operand.hbm [shape: f32[16,16], index: 11, kind: output, shape index: {}]
  %s12 = sld [smem:[#allocation0]]
  $region81: #{tpu_custom_call.1} parent=0
    _
  %s14 = ssub.s32 1, %s12
  %s15 = scalar_select 0, %s14, %s12
  $region1: #{tpu_custom_call.1} parent=0
    #allocation2 [shape = 'u8[16384]{0}', space=vmem, size = 0x4000, scoped, tag = 'input window, operand 1, single buffered']
    #allocation3 [shape = 's32[2]{0}', space=sflag, size = 0x8, scoped, tag = 'scoped memory for tpu_custom_call.1']
    #allocation4 [shape = 's32[2]{0}', space=sflag, size = 0x8, scoped, tag = 'scoped memory for tpu_custom_call.1']
    #allocation5 [shape = 'u8[8192]{0}', space=vmem, size = 0x2000, scoped, tag = 'output window, operand 0']
    %16 = vsyncpa [#allocation3], 0
    %17 = vsyncpa [#allocation4], 0
    %s18 = scalar_lea.sflag [#allocation4], 1
    %19 = vsyncpa %s18, 0
    loop: start=0, step=1, limit=4
    $region2: #{tpu_custom_call.1} parent=1 // loop_pre_header
      _
    $region3: #{tpu_custom_call.1} parent=1 // loop_header
      %s21 = sphi 0, %s25
      %p22 = scmp.ge.s32.totalorder %s21, 4
      %s31 = sphi 0, %s33
      %s34 = sphi 0, %s31
      %s35 = sphi 0, %s34
      %s51 = sphi 0, %s35
      %s55 = sphi 0, %s55
      %s57 = sphi 0, %s55
      %s58 = sphi 0, %s57
      %s72 = sphi 0, %s58
      %s76 = sphi 0, %s76
      %s78 = sphi 0, %s76
      %s79 = sphi 0, %s78
      %s93 = sphi 0, %s79
      %s97 = sphi 0, %s97
      %s99 = sphi 0, %s97
      %s100 = sphi 0, %s99
      %s114 = sphi 0, %s100
      %s118 = sphi 0, %s118
      %s120 = sphi 0, %s118
      %s121 = sphi 0, %s120
      %s135 = sphi 0, %s121
      %s139 = sphi 0, %s139
      %s141 = sphi 0, %s139
      %s142 = sphi 0, %s141
      %s156 = sphi 0, %s142
      %s160 = sphi 0, %s160
      %s162 = sphi 0, %s160
      %s163 = sphi 0, %s162
      %s177 = sphi 0, %s163
      %s181 = sphi 0, %s181
      %s183 = sphi 0, %s181
      %s184 = sphi 0, %s183
      %s198 = sphi 0, %s184
      %s202 = sphi 0, %s202
      %s204 = sphi 0, %s202
      %s205 = sphi 0, %s204
      %s219 = sphi 0, %s205
      %s223 = sphi 0, %s223
      %s225 = sphi 0, %s223
      %s226 = sphi 0, %s225
      %s240 = sphi 0, %s226
      %s244 = sphi 0, %s244
      %s246 = sphi 0, %s244
      %s247 = sphi 0, %s246
      %s261 = sphi 0, %s247
      %s267 = sphi 0, %s269
      %s270 = sphi 0, %s267
      %s271 = sphi 0, %s270
      %s287 = sphi 0, %s271
    $region4: #{tpu_custom_call.1} parent=1 // loop_header_branch
      %24 = sbr.rel (%p22) target = $region8
    $region5: #{tpu_custom_call.1} parent=1 // loop_body
      %s26 = ssub.s32 %s21, 1
      %s27 = ssub.s32 %s21, 2
      %s28 = sadd.s32 %s21, 1
      %s29 = ssub.s32 %s21, %s28
      %p30 = scmp.eq.s32.totalorder %s29, 0
      %s32 = sadd.s32 %s31, 1
      %s33 = scalar_select %p30, %s31, %s32
      %p36 = pneg %p30
      %p37 = scmp.eq.s32.totalorder %s21, 1
      %p38 = por %p36, %p37
      %p39 = scmp.ne.s32.totalorder %s31, %s34
      %p40 = scmp.eq.s32.totalorder %s21, 0
      %p41 = por %p39, %p40
      %p42 = scmp.ne.s32.totalorder %s31, %s34
      %p43 = scmp.eq.s32.totalorder %s26, 1
      %p44 = por %p42, %p43
      %p45 = scmp.ne.s32.totalorder %s34, %s35
      %p46 = scmp.eq.s32.totalorder %s26, 0
      %p47 = por %p45, %p46
      %p48 = scmp.ne.s32.totalorder %s34, %s35
      %p49 = scmp.eq.s32.totalorder %s27, 1
      %p50 = por %p48, %p49
      %p52 = scmp.ne.s32.totalorder %s35, %s51
      %p53 = scmp.eq.s32.totalorder %s27, 0
      %p54 = por %p52, %p53
      %s56 = sadd.s32 %s55, 1
      %p59 = scmp.eq.s32.totalorder %s21, 1
      %p60 = scmp.ne.s32.totalorder %s55, %s57
      %p61 = scmp.eq.s32.totalorder %s21, 0
      %p62 = por %p60, %p61
      %p63 = scmp.ne.s32.totalorder %s55, %s57
      %p64 = scmp.eq.s32.totalorder %s26, 1
      %p65 = por %p63, %p64
      %p66 = scmp.ne.s32.totalorder %s57, %s58
      %p67 = scmp.eq.s32.totalorder %s26, 0
      %p68 = por %p66, %p67
      %p69 = scmp.ne.s32.totalorder %s57, %s58
      %p70 = scmp.eq.s32.totalorder %s27, 1
      %p71 = por %p69, %p70
      %p73 = scmp.ne.s32.totalorder %s58, %s72
      %p74 = scmp.eq.s32.totalorder %s27, 0
      %p75 = por %p73, %p74
      %s77 = sadd.s32 %s76, 1
      %p80 = scmp.eq.s32.totalorder %s21, 1
      %p81 = scmp.ne.s32.totalorder %s76, %s78
      %p82 = scmp.eq.s32.totalorder %s21, 0
      %p83 = por %p81, %p82
      %p84 = scmp.ne.s32.totalorder %s76, %s78
      %p85 = scmp.eq.s32.totalorder %s26, 1
      %p86 = por %p84, %p85
      %p87 = scmp.ne.s32.totalorder %s78, %s79
      %p88 = scmp.eq.s32.totalorder %s26, 0
      %p89 = por %p87, %p88
      %p90 = scmp.ne.s32.totalorder %s78, %s79
      %p91 = scmp.eq.s32.totalorder %s27, 1
      %p92 = por %p90, %p91
      %p94 = scmp.ne.s32.totalorder %s79, %s93
      %p95 = scmp.eq.s32.totalorder %s27, 0
      %p96 = por %p94, %p95
      %s98 = sadd.s32 %s97, 1
      %p101 = scmp.eq.s32.totalorder %s21, 1
      %p102 = scmp.ne.s32.totalorder %s97, %s99
      %p103 = scmp.eq.s32.totalorder %s21, 0
      %p104 = por %p102, %p103
      %p105 = scmp.ne.s32.totalorder %s97, %s99
      %p106 = scmp.eq.s32.totalorder %s26, 1
      %p107 = por %p105, %p106
      %p108 = scmp.ne.s32.totalorder %s99, %s100
      %p109 = scmp.eq.s32.totalorder %s26, 0
      %p110 = por %p108, %p109
      %p111 = scmp.ne.s32.totalorder %s99, %s100
      %p112 = scmp.eq.s32.totalorder %s27, 1
      %p113 = por %p111, %p112
      %p115 = scmp.ne.s32.totalorder %s100, %s114
      %p116 = scmp.eq.s32.totalorder %s27, 0
      %p117 = por %p115, %p116
      %s119 = sadd.s32 %s118, 1
      %p122 = scmp.eq.s32.totalorder %s21, 1
      %p123 = scmp.ne.s32.totalorder %s118, %s120
      %p124 = scmp.eq.s32.totalorder %s21, 0
      %p125 = por %p123, %p124
      %p126 = scmp.ne.s32.totalorder %s118, %s120
      %p127 = scmp.eq.s32.totalorder %s26, 1
      %p128 = por %p126, %p127
      %p129 = scmp.ne.s32.totalorder %s120, %s121
      %p130 = scmp.eq.s32.totalorder %s26, 0
      %p131 = por %p129, %p130
      %p132 = scmp.ne.s32.totalorder %s120, %s121
      %p133 = scmp.eq.s32.totalorder %s27, 1
      %p134 = por %p132, %p133
      %p136 = scmp.ne.s32.totalorder %s121, %s135
      %p137 = scmp.eq.s32.totalorder %s27, 0
      %p138 = por %p136, %p137
      %s140 = sadd.s32 %s139, 1
      %p143 = scmp.eq.s32.totalorder %s21, 1
      %p144 = scmp.ne.s32.totalorder %s139, %s141
      %p145 = scmp.eq.s32.totalorder %s21, 0
      %p146 = por %p144, %p145
      %p147 = scmp.ne.s32.totalorder %s139, %s141
      %p148 = scmp.eq.s32.totalorder %s26, 1
      %p149 = por %p147, %p148
      %p150 = scmp.ne.s32.totalorder %s141, %s142
      %p151 = scmp.eq.s32.totalorder %s26, 0
      %p152 = por %p150, %p151
      %p153 = scmp.ne.s32.totalorder %s141, %s142
      %p154 = scmp.eq.s32.totalorder %s27, 1
      %p155 = por %p153, %p154
      %p157 = scmp.ne.s32.totalorder %s142, %s156
      %p158 = scmp.eq.s32.totalorder %s27, 0
      %p159 = por %p157, %p158
      %s161 = sadd.s32 %s160, 1
      %p164 = scmp.eq.s32.totalorder %s21, 1
      %p165 = scmp.ne.s32.totalorder %s160, %s162
      %p166 = scmp.eq.s32.totalorder %s21, 0
      %p167 = por %p165, %p166
      %p168 = scmp.ne.s32.totalorder %s160, %s162
      %p169 = scmp.eq.s32.totalorder %s26, 1
      %p170 = por %p168, %p169
      %p171 = scmp.ne.s32.totalorder %s162, %s163
      %p172 = scmp.eq.s32.totalorder %s26, 0
      %p173 = por %p171, %p172
      %p174 = scmp.ne.s32.totalorder %s162, %s163
      %p175 = scmp.eq.s32.totalorder %s27, 1
      %p176 = por %p174, %p175
      %p178 = scmp.ne.s32.totalorder %s163, %s177
      %p179 = scmp.eq.s32.totalorder %s27, 0
      %p180 = por %p178, %p179
      %s182 = sadd.s32 %s181, 1
      %p185 = scmp.eq.s32.totalorder %s21, 1
      %p186 = scmp.ne.s32.totalorder %s181, %s183
      %p187 = scmp.eq.s32.totalorder %s21, 0
      %p188 = por %p186, %p187
      %p189 = scmp.ne.s32.totalorder %s181, %s183
      %p190 = scmp.eq.s32.totalorder %s26, 1
      %p191 = por %p189, %p190
      %p192 = scmp.ne.s32.totalorder %s183, %s184
      %p193 = scmp.eq.s32.totalorder %s26, 0
      %p194 = por %p192, %p193
      %p195 = scmp.ne.s32.totalorder %s183, %s184
      %p196 = scmp.eq.s32.totalorder %s27, 1
      %p197 = por %p195, %p196
      %p199 = scmp.ne.s32.totalorder %s184, %s198
      %p200 = scmp.eq.s32.totalorder %s27, 0
      %p201 = por %p199, %p200
      %s203 = sadd.s32 %s202, 1
      %p206 = scmp.eq.s32.totalorder %s21, 1
      %p207 = scmp.ne.s32.totalorder %s202, %s204
      %p208 = scmp.eq.s32.totalorder %s21, 0
      %p209 = por %p207, %p208
      %p210 = scmp.ne.s32.totalorder %s202, %s204
      %p211 = scmp.eq.s32.totalorder %s26, 1
      %p212 = por %p210, %p211
      %p213 = scmp.ne.s32.totalorder %s204, %s205
      %p214 = scmp.eq.s32.totalorder %s26, 0
      %p215 = por %p213, %p214
      %p216 = scmp.ne.s32.totalorder %s204, %s205
      %p217 = scmp.eq.s32.totalorder %s27, 1
      %p218 = por %p216, %p217
      %p220 = scmp.ne.s32.totalorder %s205, %s219
      %p221 = scmp.eq.s32.totalorder %s27, 0
      %p222 = por %p220, %p221
      %s224 = sadd.s32 %s223, 1
      %p227 = scmp.eq.s32.totalorder %s21, 1
      %p228 = scmp.ne.s32.totalorder %s223, %s225
      %p229 = scmp.eq.s32.totalorder %s21, 0
      %p230 = por %p228, %p229
      %p231 = scmp.ne.s32.totalorder %s223, %s225
      %p232 = scmp.eq.s32.totalorder %s26, 1
      %p233 = por %p231, %p232
      %p234 = scmp.ne.s32.totalorder %s225, %s226
      %p235 = scmp.eq.s32.totalorder %s26, 0
      %p236 = por %p234, %p235
      %p237 = scmp.ne.s32.totalorder %s225, %s226
      %p238 = scmp.eq.s32.totalorder %s27, 1
      %p239 = por %p237, %p238
      %p241 = scmp.ne.s32.totalorder %s226, %s240
      %p242 = scmp.eq.s32.totalorder %s27, 0
      %p243 = por %p241, %p242
      %s245 = sadd.s32 %s244, 1
      %p248 = scmp.eq.s32.totalorder %s21, 1
      %p249 = scmp.ne.s32.totalorder %s244, %s246
      %p250 = scmp.eq.s32.totalorder %s21, 0
      %p251 = por %p249, %p250
      %p252 = scmp.ne.s32.totalorder %s244, %s246
      %p253 = scmp.eq.s32.totalorder %s26, 1
      %p254 = por %p252, %p253
      %p255 = scmp.ne.s32.totalorder %s246, %s247
      %p256 = scmp.eq.s32.totalorder %s26, 0
      %p257 = por %p255, %p256
      %p258 = scmp.ne.s32.totalorder %s246, %s247
      %p259 = scmp.eq.s32.totalorder %s27, 1
      %p260 = por %p258, %p259
      %p262 = scmp.ne.s32.totalorder %s247, %s261
      %p263 = scmp.eq.s32.totalorder %s27, 0
      %p264 = por %p262, %p263
      %s265 = ssub.s32 %s21, %s28
      %p266 = scmp.eq.s32.totalorder %s265, 0
      %s268 = sadd.s32 %s267, 1
      %s269 = scalar_select %p266, %s267, %s268
      %p272 = pneg %p266
      %p273 = scmp.eq.s32.totalorder %s21, 1
      %p274 = por %p272, %p273
      %p275 = scmp.ne.s32.totalorder %s267, %s270
      %p276 = scmp.eq.s32.totalorder %s21, 0
      %p277 = por %p275, %p276
      %p278 = scmp.ne.s32.totalorder %s267, %s270
      %p279 = scmp.eq.s32.totalorder %s26, 1
      %p280 = por %p278, %p279
      %p281 = scmp.ne.s32.totalorder %s270, %s271
      %p282 = scmp.eq.s32.totalorder %s26, 0
      %p283 = por %p281, %p282
      %p284 = scmp.ne.s32.totalorder %s270, %s271
      %p285 = scmp.eq.s32.totalorder %s27, 1
      %p286 = por %p284, %p285
      %p288 = scmp.ne.s32.totalorder %s271, %s287
      %p289 = scmp.eq.s32.totalorder %s27, 0
      %p290 = por %p288, %p289
      %p291 = scmp.le.s32.totalorder 1, %s21
      %p292 = scmp.lt.s32.totalorder %s21, 3
      %p293 = pnand %p291, %p292
      %p294 = pneg %p293
      // Predicated region
      $region9: #{tpu_custom_call.1} parent=5 // pred_check
        _
      $region10: #{tpu_custom_call.1} parent=5 // pred_check_branch
        %296 = sbr.rel (%p293) target = $region12
      $region11: #{tpu_custom_call.1} parent=5 // pred_region
        %s297 = ssub.s32 %s21, 1
        // Predicated region
        $region13: #{tpu_custom_call.1} parent=11 // pred_check
          %p298 = pneg %p68
        $region14: #{tpu_custom_call.1} parent=11 // pred_check_branch
          %300 = sbr.rel (%p298) target = $region16
        $region15: #{tpu_custom_call.1} parent=11 // pred_region
          %302 = vsyncadd [#allocation3], 0
          %s303 = sshll.u32 %s1, 4
          %s304 = int_to_ptr.hbm [resolvable:$true] %s303
          %s305 = sshll.u32 [#allocation2], 4
          %s306 = int_to_ptr.vmem [resolvable:$true] %s305
          %311 = dma.hbm_to_vmem [thread:$0]  %s304, 512, %s306, [#allocation3], 128, 128, 8
        $region16: #{tpu_custom_call.1} parent=11 // pred_fallthru
          _
        // Predicated region
        $region17: #{tpu_custom_call.1} parent=11 // pred_check
          %p312 = pneg %p89
        $region18: #{tpu_custom_call.1} parent=11 // pred_check_branch
          %314 = sbr.rel (%p312) target = $region20
        $region19: #{tpu_custom_call.1} parent=11 // pred_region
          _
        $region20: #{tpu_custom_call.1} parent=11 // pred_fallthru
          _
        // Predicated region
        $region21: #{tpu_custom_call.1} parent=11 // pred_check
          %p315 = pneg %p110
        $region22: #{tpu_custom_call.1} parent=11 // pred_check_branch
          %317 = sbr.rel (%p315) target = $region24
        $region23: #{tpu_custom_call.1} parent=11 // pred_region
          _
        $region24: #{tpu_custom_call.1} parent=11 // pred_fallthru
          _
        // Predicated region
        $region25: #{tpu_custom_call.1} parent=11 // pred_check
          %p318 = pneg %p131
        $region26: #{tpu_custom_call.1} parent=11 // pred_check_branch
          %320 = sbr.rel (%p318) target = $region28
        $region27: #{tpu_custom_call.1} parent=11 // pred_region
          _
        $region28: #{tpu_custom_call.1} parent=11 // pred_fallthru
          _
        // Predicated region
        $region29: #{tpu_custom_call.1} parent=11 // pred_check
          %p321 = pneg %p152
        $region30: #{tpu_custom_call.1} parent=11 // pred_check_branch
          %323 = sbr.rel (%p321) target = $region32
        $region31: #{tpu_custom_call.1} parent=11 // pred_region
          _
        $region32: #{tpu_custom_call.1} parent=11 // pred_fallthru
          _
        // Predicated region
        $region33: #{tpu_custom_call.1} parent=11 // pred_check
          %p324 = pneg %p173
        $region34: #{tpu_custom_call.1} parent=11 // pred_check_branch
          %326 = sbr.rel (%p324) target = $region36
        $region35: #{tpu_custom_call.1} parent=11 // pred_region
          _
        $region36: #{tpu_custom_call.1} parent=11 // pred_fallthru
          _
        // Predicated region
        $region37: #{tpu_custom_call.1} parent=11 // pred_check
          %p327 = pneg %p194
        $region38: #{tpu_custom_call.1} parent=11 // pred_check_branch
          %329 = sbr.rel (%p327) target = $region40
        $region39: #{tpu_custom_call.1} parent=11 // pred_region
          _
        $region40: #{tpu_custom_call.1} parent=11 // pred_fallthru
          _
        // Predicated region
        $region41: #{tpu_custom_call.1} parent=11 // pred_check
          %p330 = pneg %p215
        $region42: #{tpu_custom_call.1} parent=11 // pred_check_branch
          %332 = sbr.rel (%p330) target = $region44
        $region43: #{tpu_custom_call.1} parent=11 // pred_region
          _
        $region44: #{tpu_custom_call.1} parent=11 // pred_fallthru
          _
        // Predicated region
        $region45: #{tpu_custom_call.1} parent=11 // pred_check
          %p333 = pneg %p236
        $region46: #{tpu_custom_call.1} parent=11 // pred_check_branch
          %335 = sbr.rel (%p333) target = $region48
        $region47: #{tpu_custom_call.1} parent=11 // pred_region
          _
        $region48: #{tpu_custom_call.1} parent=11 // pred_fallthru
          _
        // Predicated region
        $region49: #{tpu_custom_call.1} parent=11 // pred_check
          %p336 = pneg %p257
        $region50: #{tpu_custom_call.1} parent=11 // pred_check_branch
          %338 = sbr.rel (%p336) target = $region52
        $region51: #{tpu_custom_call.1} parent=11 // pred_region
          _
        $region52: #{tpu_custom_call.1} parent=11 // pred_fallthru
          _
      $region12: #{tpu_custom_call.1} parent=5 // pred_fallthru
        _
      %p339 = scmp.lt.s32.totalorder %s21, 2
      // Predicated region
      $region53: #{tpu_custom_call.1} parent=5 // pred_check
        %p340 = pneg %p339
      $region54: #{tpu_custom_call.1} parent=5 // pred_check_branch
        %342 = sbr.rel (%p340) target = $region56
      $region55: #{tpu_custom_call.1} parent=5 // pred_region
        // Predicated region
        $region57: #{tpu_custom_call.1} parent=55 // pred_check
          %p343 = pneg %p41
        $region58: #{tpu_custom_call.1} parent=55 // pred_check_branch
          %345 = sbr.rel (%p343) target = $region60
        $region59: #{tpu_custom_call.1} parent=55 // pred_region
          %p346 = scmp.lt.s32.totalorder %s21, 1
          %s347 = scalar_select %p346, %s21, 1
          %s348 = smul.addr %s347, 8
          %s349 = scalar_lea.vmem %s0, %s348
        $region60: #{tpu_custom_call.1} parent=55 // pred_fallthru
          _
      $region56: #{tpu_custom_call.1} parent=5 // pred_fallthru
        _
      %p350 = scmp.le.s32.totalorder 1, %s21
      %p351 = scmp.lt.s32.totalorder %s21, 3
      %p352 = pnand %p350, %p351
      %p353 = pneg %p352
      // Predicated region
      $region61: #{tpu_custom_call.1} parent=5 // pred_check
        _
      $region62: #{tpu_custom_call.1} parent=5 // pred_check_branch
        %355 = sbr.rel (%p352) target = $region64
      $region63: #{tpu_custom_call.1} parent=5 // pred_region
        %s356 = ssub.s32 %s21, 1
        // Predicated region
        $region65: #{tpu_custom_call.1} parent=63 // pred_check
          %p357 = pneg %p68
        $region66: #{tpu_custom_call.1} parent=63 // pred_check_branch
          %359 = sbr.rel (%p357) target = $region68
        $region67: #{tpu_custom_call.1} parent=63 // pred_region
          %361 = dma.done [#allocation3], 512
        $region68: #{tpu_custom_call.1} parent=63 // pred_fallthru
          _
        %p362 = scmp.lt.s32.totalorder %s26, 1
        %s363 = scalar_select %p362, %s26, 1
        %s364 = smul.addr %s363, 8
        %s365 = scalar_lea.vmem %s0, %s364
        %p366 = pneg %p47
        %p367 = pneg %p44
        %p368 = pneg %p68
        %p369 = pneg %p65
        %p370 = pneg %p89
        %p371 = pneg %p86
        %p372 = pneg %p110
        %p373 = pneg %p107
        %p374 = pneg %p131
        %p375 = pneg %p128
        %p376 = pneg %p152
        %p377 = pneg %p149
        %p378 = pneg %p173
        %p379 = pneg %p170
        %p380 = pneg %p194
        %p381 = pneg %p191
        %p382 = pneg %p215
        %p383 = pneg %p212
        %p384 = pneg %p236
        %p385 = pneg %p233
        %p386 = pneg %p257
        %p387 = pneg %p254
        %p388 = pneg %p283
        %p389 = pneg %p280
        %s390 = sand.u32 %s270, 1
        %s391 = scalar_lea.sflag [#allocation4], %s390
        %s392 = sand.u32 %s270, 1
        %s393 = smul.addr %s392, 8
        %s394 = scalar_lea.vmem [#allocation5], %s393
        %p395 = scmp.lt.s32.totalorder %s26, 1
        %s396 = scalar_select %p395, %s26, 1
        %s397 = smul.addr %s396, 8
        %s398 = scalar_lea.vmem %s0, %s397
        %v399 = vld [vmem:[%s398] sm:$0xff]
        %v400 = vld [vmem:[#allocation2] sm:$0xff]
        %v401 = vld [vmem:[#allocation2 + $0x8] sm:$0xff]
        %v402 = vld [vmem:[#allocation2 + $0x10] sm:$0xff]
        %v403 = vld [vmem:[#allocation2 + $0x18] sm:$0xff]
        %v404 = vld [vmem:[%s2] sm:$0x1]
        %v406 = vperm.slane %v404, 0
        %vm408 = vcmask 261120
        %v410 = vsel %vm408, %v399, 0
        %412 = vmatpush.msra.mxu0 0.0
        %413 = vmatpush.msra.mxu0 0.0
        %414 = vmatpush.msra.mxu0 0.0
        %415 = vmatpush.msra.mxu0 0.0
        %416 = vmatpush.msra.mxu0 0.0
        %417 = vmatpush.msra.mxu0 0.0
        %418 = vmatpush.msra.mxu0 0.0
        %419 = vmatpush.msra.mxu0 0.0
        %420 = vmatpush.msra.mxu0 0.0
        %421 = vmatpush.msra.mxu0 0.0
        %422 = vmatpush.msra.mxu0 0.0
        %423 = vmatpush.msra.mxu0 0.0
        %424 = vmatpush.msra.mxu0 %v403
        %425 = vmatpush.msra.mxu0 %v402
        %426 = vmatpush.msra.mxu0 %v401
        %427 = vmatpush.msra.mxu0 %v400
        %428 = vmatmul.f32.gmra.mxu0 %v410
        %v429 = vpop.f32.mrf.mxu0
        %v430 = vadd.f32 %v406, %v429
        %431 = vdwg.mxu0
        %v432 = vld [vmem:[%s3] sm:$0x1]
        %v433 = vld [vmem:[%s4] sm:$0x1]
        %vm434 = vcmask 523264
        %v435 = vsel %vm434, %v430, 0.0
        %436 = vadd.xlane.f32.xlu0 %v435
        %v437 = vpop.xlane.xlu0 %436
        %v438 = vrcp.pop 64.0
        %v439 = vmul.f32 64.0, %v438
        %v440 = vsub.f32 1.0, %v439
        %v441 = vmul.f32 %v438, %v440
        %v442 = vadd.f32 %v438, %v441
        %vm443 = vweird.f32 %v438
        %v444 = vsel %vm443, %v438, %v442
        %v445 = vmul.f32 %v437, %v444
        %v446 = vsub.f32 %v430, %v445
        %v447 = vmul.f32 %v446, %v446
        %v448 = vsel %vm434, %v447, 0.0
        %449 = vadd.xlane.f32.xlu0 %v448
        %v450 = vpop.xlane.xlu0 %449
        %v451 = vmul.f32 %v450, %v444
        %v452 = vadd.f32 %v451, 1e-05
        %v453 = vrsqrt.pop %v452
        %v454 = vmul.f32 %v453, %v452
        %v455 = vmul.f32 %v454, %v453
        %v456 = vmul.f32 0.5, %v455
        %v457 = vsub.f32 1.5, %v456
        %v458 = vmul.f32 %v453, %v457
        %vm459 = vweird.f32 %v452
        %vm460 = vweird.f32 %v453
        %vm461 = vmor %vm459, %vm460
        %v462 = vsel %vm461, %v453, %v458
        %v463 = vmul.f32 %v446, %v462
        %v465 = vperm.slane %v432, 0
        %v467 = vmul.f32 %v463, %v465
        %v469 = vperm.slane %v433, 0
        %v471 = vadd.f32 %v467, %v469
        %v472 = vmax.f32 %v471, 0.0
        %v473 = vld [vmem:[%s5] sm:$0xff]
        %v474 = vld [vmem:[%s5 + $0x8] sm:$0xff]
        %v475 = vld [vmem:[%s5 + $0x10] sm:$0xff]
        %v476 = vld [vmem:[%s5 + $0x18] sm:$0xff]
        %v477 = vld [vmem:[%s5 + $0x20] sm:$0xff]
        %v478 = vld [vmem:[%s5 + $0x28] sm:$0xff]
        %v479 = vld [vmem:[%s5 + $0x30] sm:$0xff]
        %v480 = vld [vmem:[%s5 + $0x38] sm:$0xff]
        %v481 = vld [vmem:[%s6] sm:$0x1]
        %v483 = vperm.slane %v481, 0
        %v486 = vsel %vm434, %v472, 0
        %488 = vmatpush.msra.mxu0 0.0
        %489 = vmatpush.msra.mxu0 0.0
        %490 = vmatpush.msra.mxu0 0.0
        %491 = vmatpush.msra.mxu0 0.0
        %492 = vmatpush.msra.mxu0 0.0
        %493 = vmatpush.msra.mxu0 0.0
        %494 = vmatpush.msra.mxu0 0.0
        %495 = vmatpush.msra.mxu0 0.0
        %496 = vmatpush.msra.mxu0 %v480
        %497 = vmatpush.msra.mxu0 %v479
        %498 = vmatpush.msra.mxu0 %v478
        %499 = vmatpush.msra.mxu0 %v477
        %500 = vmatpush.msra.mxu0 %v476
        %501 = vmatpush.msra.mxu0 %v475
        %502 = vmatpush.msra.mxu0 %v474
        %503 = vmatpush.msra.mxu0 %v473
        %504 = vmatmul.f32.gmra.mxu0 %v486
        %v505 = vpop.f32.mrf.mxu0
        %v506 = vadd.f32 %v483, %v505
        %507 = vdwg.mxu0
        %v508 = vld [vmem:[%s7] sm:$0x1]
        %v509 = vld [vmem:[%s8] sm:$0x1]
        %v510 = vsel %vm434, %v506, 0.0
        %511 = vadd.xlane.f32.xlu0 %v510
        %v512 = vpop.xlane.xlu0 %511
        %v513 = vmul.f32 %v512, %v444
        %v514 = vsub.f32 %v506, %v513
        %v515 = vmul.f32 %v514, %v514
        %v516 = vsel %vm434, %v515, 0.0
        %517 = vadd.xlane.f32.xlu0 %v516
        %v518 = vpop.xlane.xlu0 %517
        %v519 = vmul.f32 %v518, %v444
        %v520 = vadd.f32 %v519, 1e-05
        %v521 = vrsqrt.pop %v520
        %v522 = vmul.f32 %v521, %v520
        %v523 = vmul.f32 %v522, %v521
        %v524 = vmul.f32 0.5, %v523
        %v525 = vsub.f32 1.5, %v524
        %v526 = vmul.f32 %v521, %v525
        %vm527 = vweird.f32 %v520
        %vm528 = vweird.f32 %v521
        %vm529 = vmor %vm527, %vm528
        %v530 = vsel %vm529, %v521, %v526
        %v531 = vmul.f32 %v514, %v530
        %v533 = vperm.slane %v508, 0
        %v535 = vmul.f32 %v531, %v533
        %v537 = vperm.slane %v509, 0
        %v539 = vadd.f32 %v535, %v537
        %v540 = vmax.f32 %v539, 0.0
        %v541 = vld [vmem:[%s9] sm:$0xff]
        %v542 = vld [vmem:[%s9 + $0x8] sm:$0xff]
        %v543 = vld [vmem:[%s9 + $0x10] sm:$0xff]
        %v544 = vld [vmem:[%s9 + $0x18] sm:$0xff]
        %v545 = vld [vmem:[%s9 + $0x20] sm:$0xff]
        %v546 = vld [vmem:[%s9 + $0x28] sm:$0xff]
        %v547 = vld [vmem:[%s9 + $0x30] sm:$0xff]
        %v548 = vld [vmem:[%s9 + $0x38] sm:$0xff]
        %v549 = vld [vmem:[%s10] sm:$0x1]
        %v551 = vperm.slane %v549, 0
        %v554 = vsel %vm434, %v540, 0
        %556 = vmatpush.msra.mxu0 0.0
        %557 = vmatpush.msra.mxu0 0.0
        %558 = vmatpush.msra.mxu0 0.0
        %559 = vmatpush.msra.mxu0 0.0
        %560 = vmatpush.msra.mxu0 0.0
        %561 = vmatpush.msra.mxu0 0.0
        %562 = vmatpush.msra.mxu0 0.0
        %563 = vmatpush.msra.mxu0 0.0
        %564 = vmatpush.msra.mxu0 %v548
        %565 = vmatpush.msra.mxu0 %v547
        %566 = vmatpush.msra.mxu0 %v546
        %567 = vmatpush.msra.mxu0 %v545
        %568 = vmatpush.msra.mxu0 %v544
        %569 = vmatpush.msra.mxu0 %v543
        %570 = vmatpush.msra.mxu0 %v542
        %571 = vmatpush.msra.mxu0 %v541
        %572 = vmatmul.f32.gmra.mxu0 %v554
        %v573 = vpop.f32.mrf.mxu0
        %v574 = vadd.f32 %v551, %v573
        %575 = vdwg.mxu0
        %vm576 = vcmask 130048
        %577 = vst.msk [vmem:[%s394] sm:$0xff] %vm576, %v574
        %s578 = sand.u32 %s270, 1
        %s579 = scalar_lea.sflag [#allocation4], %s578
        %s580 = sand.u32 %s270, 1
        %s581 = smul.addr %s580, 8
        %s582 = scalar_lea.vmem [#allocation5], %s581
        // Predicated region
        $region69: #{tpu_custom_call.1} parent=63 // pred_check
          %p583 = pneg %p280
        $region70: #{tpu_custom_call.1} parent=63 // pred_check_branch
          %585 = sbr.rel (%p583) target = $region72
        $region71: #{tpu_custom_call.1} parent=63 // pred_region
          %587 = vsyncadd %s579, 0
          %s588 = smul.addr %s26, 8
          %s589 = scalar_lea.hbm %s11, %s588
          %s591 = sshll.u32 %s582, 4
          %s592 = int_to_ptr.vmem [resolvable:$true] %s591
          %s593 = sshll.u32 %s589, 4
          %s594 = int_to_ptr.hbm [resolvable:$true] %s593
          %596 = dma.vmem_to_hbm [thread:$0]  %s592, 128, %s594, %s579
        $region72: #{tpu_custom_call.1} parent=63 // pred_fallthru
          _
      $region64: #{tpu_custom_call.1} parent=5 // pred_fallthru
        _
      %p597 = scmp.le.s32.totalorder 2, %s21
      // Predicated region
      $region73: #{tpu_custom_call.1} parent=5 // pred_check
        %p598 = pneg %p597
      $region74: #{tpu_custom_call.1} parent=5 // pred_check_branch
        %600 = sbr.rel (%p598) target = $region76
      $region75: #{tpu_custom_call.1} parent=5 // pred_region
        %s601 = ssub.s32 %s21, 2
        // Predicated region
        $region77: #{tpu_custom_call.1} parent=75 // pred_check
          %p602 = pneg %p286
        $region78: #{tpu_custom_call.1} parent=75 // pred_check_branch
          %604 = sbr.rel (%p602) target = $region80
        $region79: #{tpu_custom_call.1} parent=75 // pred_region
          %s605 = sand.u32 %s271, 1
          %s606 = scalar_lea.sflag [#allocation4], %s605
          %s607 = sand.u32 %s271, 1
          %s608 = smul.addr %s607, 8
          %s609 = scalar_lea.vmem [#allocation5], %s608
          %611 = dma.done %s606, 128
        $region80: #{tpu_custom_call.1} parent=75 // pred_fallthru
          _
      $region76: #{tpu_custom_call.1} parent=5 // pred_fallthru
        _
    $region6: #{tpu_custom_call.1} parent=1 // loop_footer
      %s25 = sadd.s32 1, %s21
    $region7: #{tpu_custom_call.1} parent=1 // loop_footer_branch
      %20 = sbr.rel target = $region3
    $region8: #{tpu_custom_call.1} parent=1 // loop_exit
      _
    %612 = vsyncpa [#allocation3], 1
    %s613 = scalar_lea.sflag [#allocation3], 1
    %614 = vsyncpa %s613, 1
    %615 = vsyncpa [#allocation4], 1
    %s616 = scalar_lea.sflag [#allocation4], 1
    %617 = vsyncpa %s616, 1

</llo_original>
